<compile_context>
chip_gen: v7x
topology: tpu7x:2x2x1
jax: 0.10.0
libtpu: 0.0.40
codegen_flags: <defaults>
</compile_context>

<pallas_src>
import functools

import jax
import jax.numpy as jnp
from jax import lax
from jax.experimental import pallas as pl
from jax.experimental.pallas import tpu as pltpu


_LANE = 128      # vreg lane width
_SUBLANE = 8     # f32 sublane packing
_SUB_L = 512     # in-kernel lane sub-chunk width (keeps operands ~4-5 vregs)


def _round_up(a, m):
    return (a + m - 1) // m * m


def _conv1d_kernel(x_ref, w_ref, b_ref, o_ref, *, K, stride, c_in_pad, T_L, sub):
    """One (sample, L-tile) grid step.

    x_ref : (1, stride*c_in_pad, Q)   phased, zero-padded input (full sample)
    w_ref : (K, C_out_pad, c_in_pad)  per-tap weight planes (zero-padded)
    b_ref : (C_out_pad, 1)
    o_ref : (1, C_out_pad, T_L)       one lane-dense output tile
    """
    j = pl.program_id(1)
    c_out_pad = o_ref.shape[1]
    n_phase = min(stride, K)
    n_sub = T_L // sub

    # Hoisted once per grid step.
    w_taps = [w_ref[k] for k in range(K)]                     # K x (C_out_pad, c_in_pad)
    bias = jnp.broadcast_to(b_ref[...], (c_out_pad, sub))     # hoist the broadcast

    # Largest tap column-shift per phase (static python ints).
    max_off = [(K - 1 - p) // stride for p in range(n_phase)]

    for s in range(n_sub):                                    # static unroll
        q0 = pl.multiple_of(j * T_L + s * sub, _LANE)         # 128-aligned lane start
        # One aligned window load per phase (+128-lane halo iff a tap needs a
        # shift); taps are static lane-shifted views of that window.
        wins = []
        for p in range(n_phase):
            wid = sub + (_LANE if max_off[p] > 0 else 0)
            wins.append(x_ref[0, pl.ds(p * c_in_pad, c_in_pad), pl.ds(q0, wid)])
        acc = bias
        for k in range(K):                                    # K accumulating matmuls
            off = k // stride
            tap = wins[k % stride][:, off:off + sub]
            acc = acc + jnp.dot(w_taps[k], tap,
                                preferred_element_type=jnp.float32,
                                precision=lax.Precision.HIGHEST)
        o_ref[0, :, pl.ds(s * sub, sub)] = acc.astype(o_ref.dtype)


def conv1d_pallas(x, weight, bias, *, stride=1, padding=0, tile_l=4096):
    """Conv1d forward matching torch.nn.Conv1d semantics (NCL layout)."""
    N, C_in, L = x.shape
    C_out, C_in_w, K = weight.shape
    assert C_in == C_in_w
    assert (K - 1) // stride <= _LANE, "tap halo exceeds one 128-lane block"
    L_out = (L + 2 * padding - K) // stride + 1
    assert L_out >= 1

    c_in_pad = _round_up(C_in, _SUBLANE)
    c_out_pad = _round_up(C_out, _SUBLANE)

    # ---- L tiling: lane-dense tiles, a multiple of the in-kernel sub-chunk ---
    T_L = min(_round_up(L_out, _LANE), _round_up(max(tile_l, _LANE), _LANE))
    if T_L >= _SUB_L:
        T_L = _round_up(T_L, _SUB_L)
        sub = _SUB_L
    else:
        sub = T_L
    num_tiles = pl.cdiv(L_out, T_L)
    L_out_pad = num_tiles * T_L

    # ---- phased-input columns: tile coverage + one 128-lane tap halo ---------
    q_cover = -(-(L + 2 * padding) // stride)                 # ceil div
    Q = _round_up(max(num_tiles * T_L + _LANE, q_cover), _LANE)
    L_total = Q * stride
    pad_right = L_total - L - padding                         # >= padding

    # ---- wrapper-side layout (fusable into the pallas_call input DMA) --------
    if stride == 1:
        # Phase re-layout is the identity: just zero-pad channels & length.
        x_proc = jnp.pad(x, ((0, 0), (0, c_in_pad - C_in), (padding, pad_right)))
    else:
        x_pad = jnp.pad(x, ((0, 0), (0, 0), (padding, pad_right)))
        # phase planes: x_proc[n, s*c_in_pad + c, q] == x_pad[n, c, q*stride + s]
        xp = x_pad.reshape(N, C_in, Q, stride).transpose(0, 3, 1, 2)
        xp = jnp.pad(xp, ((0, 0), (0, 0), (0, c_in_pad - C_in), (0, 0)))
        x_proc = xp.reshape(N, stride * c_in_pad, Q)

    w_p = jnp.pad(weight, ((0, c_out_pad - C_out), (0, c_in_pad - C_in), (0, 0)))
    w_k = jnp.transpose(w_p, (2, 0, 1))                       # (K, C_out_pad, c_in_pad)
    b_p = jnp.pad(bias, (0, c_out_pad - C_out)).reshape(c_out_pad, 1)

    # ---- VMEM budget: bound the double-buffered blocks (v7x has 64 MiB/TC) ---
    in_block = stride * c_in_pad * Q * 4
    out_block = c_out_pad * T_L * 4
    w_bytes = K * c_out_pad * c_in_pad * 4 + c_out_pad * 4
    needed = 2 * (in_block + out_block + w_bytes) + (1 << 20)
    assert needed <= 48 * 1024 * 1024, (
        "conv1d_pallas: resident input/output blocks exceed the VMEM budget; "
        "reduce tile_l or halo-tile the phased input along Q.")
    vmem_limit = min(64 * 1024 * 1024, max(needed, 32 * 1024 * 1024))

    kernel = functools.partial(_conv1d_kernel, K=K, stride=stride,
                               c_in_pad=c_in_pad, T_L=T_L, sub=sub)

    out_pad = pl.pallas_call(
        kernel,
        out_shape=jax.ShapeDtypeStruct((N, c_out_pad, L_out_pad), x.dtype),
        grid_spec=pltpu.PrefetchScalarGridSpec(
            num_scalar_prefetch=0,
            grid=(N, num_tiles),
            in_specs=[
                # full phased sequence of one sample, resident across L tiles
                pl.BlockSpec((1, stride * c_in_pad, Q), lambda b, j: (b, 0, 0)),
                # per-tap weight planes & bias: resident across the whole grid
                pl.BlockSpec((K, c_out_pad, c_in_pad), lambda b, j: (0, 0, 0)),
                pl.BlockSpec((c_out_pad, 1), lambda b, j: (0, 0)),
            ],
            out_specs=pl.BlockSpec((1, c_out_pad, T_L), lambda b, j: (b, 0, j)),
        ),
        compiler_params=pltpu.CompilerParams(
            dimension_semantics=("parallel", "parallel"),
            vmem_limit_bytes=vmem_limit,
            allow_input_fusion=[True, True, True],
        ),
    )(x_proc, w_k, b_p)

    if c_out_pad != C_out or L_out_pad != L_out:
        out_pad = out_pad[:, :C_out, :L_out]
    return out_pad


class ConvLayer:
    """JAX/Pallas equivalent of the PyTorch `conv_layer` module."""

    def __init__(self, config, key):
        conv = config["conv"]
        self.stride = conv["stride"]
        self.padding = conv["padding"]
        c_in, c_out, k = (conv["in_channels"], conv["out_channels"],
                          conv["kernel_size"])
        kw, kb = jax.random.split(key)
        # Deterministic synthetic init (Conv1d-style uniform bound).
        bound = 1.0 / jnp.sqrt(jnp.asarray(c_in * k, jnp.float32))
        self.weight = jax.random.uniform(kw, (c_out, c_in, k), jnp.float32,
                                         -bound, bound)
        self.bias = jax.random.uniform(kb, (c_out,), jnp.float32,
                                       -bound, bound)

    def __call__(self, x, l=None, *, tile_l=4096):
        # `l` (lengths) is unused in the reference forward pass.
        return conv1d_pallas(x, self.weight, self.bias,
                             stride=self.stride, padding=self.padding,
                             tile_l=tile_l)


def _torch_conv1d_ref(x, w, b, stride, padding):
    y = lax.conv_general_dilated(
        x, w, window_strides=(stride,), padding=[(padding, padding)],
        dimension_numbers=("NCW", "OIW", "NCW"),
        precision=lax.Precision.HIGHEST)
    return y + b.reshape(1, -1, 1)


def _check(out, x, w, b, stride, padding, tol=1e-4):
    ref = _torch_conv1d_ref(x, w, b, stride, padding)
    assert out.shape == ref.shape, (out.shape, ref.shape)
    assert float(jnp.max(jnp.abs(out - ref))) < tol


if __name__ == "__main__":
    key = jax.random.PRNGKey(0)
    k_param, k_x, k_p2, k_x2, k_p3, k_x3, k_p4, k_x4 = jax.random.split(key, 8)

    # A) Config matching the reference module usage (stride=1, padding=1).
    config = {"conv": {"in_channels": 4, "out_channels": 8, "kernel_size": 3,
                       "stride": 1, "padding": 1}}
    layer = ConvLayer(config, k_param)
    N, C_in, L = 2, 4, 16
    x = jax.random.normal(k_x, (N, C_in, L), jnp.float32)
    lengths = jnp.full((N,), L, jnp.int32)            # ignored, like the reference
    out = jax.block_until_ready(layer(x, lengths))
    _check(out, x, layer.weight, layer.bias, 1, 1)

    # B) Strided / phase-plane path.
    cfg2 = {"conv": {"in_channels": 4, "out_channels": 8, "kernel_size": 5,
                     "stride": 2, "padding": 2}}
    layer2 = ConvLayer(cfg2, k_p2)
    x2 = jax.random.normal(k_x2, (2, 4, 16), jnp.float32)
    out2 = jax.block_until_ready(layer2(x2, None))
    _check(out2, x2, layer2.weight, layer2.bias, 2, 2)

    # C) stride=3, multi-tile, non-aligned C_in/C_out (channel padding + slice).
    cfg3 = {"conv": {"in_channels": 3, "out_channels": 5, "kernel_size": 7,
                     "stride": 3, "padding": 3}}
    layer3 = ConvLayer(cfg3, k_p3)
    x3 = jax.random.normal(k_x3, (2, 3, 500), jnp.float32)
    out3 = jax.block_until_ready(layer3(x3, None, tile_l=128))
    _check(out3, x3, layer3.weight, layer3.bias, 3, 3)

    # D) stride=1, multi-tile AND multi-sub-chunk path.
    cfg4 = {"conv": {"in_channels": 6, "out_channels": 16, "kernel_size": 3,
                     "stride": 1, "padding": 1}}
    layer4 = ConvLayer(cfg4, k_p4)
    x4 = jax.random.normal(k_x4, (2, 6, 1300), jnp.float32)
    out4 = jax.block_until_ready(layer4(x4, None, tile_l=1024))
    _check(out4, x4, layer4.weight, layer4.bias, 1, 1)

    print("KERNEL_OK")
</pallas_src>

<mosaic_0001>
module attributes {stable_mosaic.version = 11 : i64} {
  func.func @_conv1d_kernel(%arg0: i32, %arg1: i32, %arg2: memref<1x8x256xf32, #tpu.memory_space<vmem>>, %arg3: memref<3x8x8xf32, #tpu.memory_space<vmem>>, %arg4: memref<8x1xf32, #tpu.memory_space<vmem>>, %arg5: memref<1x8x128xf32, #tpu.memory_space<vmem>>) attributes {dimension_semantics = [#tpu.dimension_semantics<parallel>, #tpu.dimension_semantics<parallel>], iteration_bounds = array<i64: 2, 1>, scalar_prefetch = 0 : i64, scratch_operands = 0 : i64, tpu.core_type = #tpu.core_type<tc>, window_params = [{transform_indices = @transform_0, window_bounds = array<i64: 1, 8, 256>}, {pipeline_mode = #tpu.pipeline_mode<synchronous>, transform_indices = @transform_1, window_bounds = array<i64: 3, 8, 8>}, {pipeline_mode = #tpu.pipeline_mode<synchronous>, transform_indices = @transform_2, window_bounds = array<i64: 8, 1>}, {transform_indices = @transform_3, window_bounds = array<i64: 1, 8, 128>}]} {
    %c0 = arith.constant 0 : index
    %c0_0 = arith.constant 0 : index
    %c0_1 = arith.constant 0 : index
    %0 = vector.load %arg3[%c0, %c0_0, %c0_1] : memref<3x8x8xf32, #tpu.memory_space<vmem>>, vector<1x8x8xf32>
    %1 = vector.shape_cast %0 : vector<1x8x8xf32> to vector<8x8xf32>
    %c1 = arith.constant 1 : index
    %c0_2 = arith.constant 0 : index
    %c0_3 = arith.constant 0 : index
    %2 = vector.load %arg3[%c1, %c0_2, %c0_3] : memref<3x8x8xf32, #tpu.memory_space<vmem>>, vector<1x8x8xf32>
    %3 = vector.shape_cast %2 : vector<1x8x8xf32> to vector<8x8xf32>
    %c2 = arith.constant 2 : index
    %c0_4 = arith.constant 0 : index
    %c0_5 = arith.constant 0 : index
    %4 = vector.load %arg3[%c2, %c0_4, %c0_5] : memref<3x8x8xf32, #tpu.memory_space<vmem>>, vector<1x8x8xf32>
    %5 = vector.shape_cast %4 : vector<1x8x8xf32> to vector<8x8xf32>
    %c0_6 = arith.constant 0 : index
    %c0_7 = arith.constant 0 : index
    %6 = vector.load %arg4[%c0_6, %c0_7] : memref<8x1xf32, #tpu.memory_space<vmem>>, vector<8x1xf32>
    %7 = vector.shape_cast %6 : vector<8x1xf32> to vector<8x1xf32>
    %8 = vector.broadcast %7 : vector<8x1xf32> to vector<8x128xf32>
    %c128_i32 = arith.constant 128 : i32
    %9 = arith.muli %arg1, %c128_i32 : i32
    %c0_i32 = arith.constant 0 : i32
    %10 = arith.addi %9, %c0_i32 : i32
    %11 = tpu.assume_multiple %10, 128 : i32
    %c0_8 = arith.constant 0 : index
    %c0_9 = arith.constant 0 : index
    %12 = arith.index_cast %11 : i32 to index
    %13 = vector.load %arg2[%c0_8, %c0_9, %12] : memref<1x8x256xf32, #tpu.memory_space<vmem>>, vector<1x8x256xf32>
    %14 = vector.shape_cast %13 : vector<1x8x256xf32> to vector<8x256xf32>
    %15 = vector.extract_strided_slice %14 {offsets = [0, 0], sizes = [8, 128], strides = [1, 1]} : vector<8x256xf32> to vector<8x128xf32>
    %cst = arith.constant dense<0.000000e+00> : vector<8x128xf32>
    %16 = tpu.matmul %1, %15, %cst {dimension_numbers = #tpu.dot_dimension_numbers<[1], [0], [0], [1], [0, 0, 1, 1], [], []>, precision = #tpu.contract_precision<fp32>} : vector<8x8xf32>, vector<8x128xf32>, vector<8x128xf32> -> vector<8x128xf32>
    %17 = arith.addf %8, %16 : vector<8x128xf32>
    %18 = vector.extract_strided_slice %14 {offsets = [0, 1], sizes = [8, 128], strides = [1, 1]} : vector<8x256xf32> to vector<8x128xf32>
    %cst_10 = arith.constant dense<0.000000e+00> : vector<8x128xf32>
    %19 = tpu.matmul %3, %18, %cst_10 {dimension_numbers = #tpu.dot_dimension_numbers<[1], [0], [0], [1], [0, 0, 1, 1], [], []>, precision = #tpu.contract_precision<fp32>} : vector<8x8xf32>, vector<8x128xf32>, vector<8x128xf32> -> vector<8x128xf32>
    %20 = arith.addf %17, %19 : vector<8x128xf32>
    %21 = vector.extract_strided_slice %14 {offsets = [0, 2], sizes = [8, 128], strides = [1, 1]} : vector<8x256xf32> to vector<8x128xf32>
    %cst_11 = arith.constant dense<0.000000e+00> : vector<8x128xf32>
    %22 = tpu.matmul %5, %21, %cst_11 {dimension_numbers = #tpu.dot_dimension_numbers<[1], [0], [0], [1], [0, 0, 1, 1], [], []>, precision = #tpu.contract_precision<fp32>} : vector<8x8xf32>, vector<8x128xf32>, vector<8x128xf32> -> vector<8x128xf32>
    %23 = arith.addf %20, %22 : vector<8x128xf32>
    %c0_12 = arith.constant 0 : index
    %c0_13 = arith.constant 0 : index
    %c0_14 = arith.constant 0 : index
    %24 = vector.load %arg5[%c0_12, %c0_13, %c0_14] : memref<1x8x128xf32, #tpu.memory_space<vmem>>, vector<1x8x128xf32>
    %25 = vector.shape_cast %24 : vector<1x8x128xf32> to vector<8x128xf32>
    %26 = vector.shape_cast %23 : vector<8x128xf32> to vector<1x8x128xf32>
    tpu.vector_store %arg5[%c0_12, %c0_13, %c0_14], %26 {strides = array<i32>} : memref<1x8x128xf32, #tpu.memory_space<vmem>>, vector<1x8x128xf32>,
    return
  }
  func.func @transform_0(%arg0: i32, %arg1: i32) -> (i32, i32, i32) {
    %c0_i32 = arith.constant 0 : i32
    %c0_i32_0 = arith.constant 0 : i32
    %c0_i32_1 = arith.constant 0 : i32
    return %arg0, %c0_i32, %c0_i32_0 : i32, i32, i32
  }
  func.func @transform_1(%arg0: i32, %arg1: i32) -> (i32, i32, i32) {
    %c0_i32 = arith.constant 0 : i32
    %c0_i32_0 = arith.constant 0 : i32
    %c0_i32_1 = arith.constant 0 : i32
    %c0_i32_2 = arith.constant 0 : i32
    return %c0_i32, %c0_i32_0, %c0_i32_1 : i32, i32, i32
  }
  func.func @transform_2(%arg0: i32, %arg1: i32) -> (i32, i32) {
    %c0_i32 = arith.constant 0 : i32
    %c0_i32_0 = arith.constant 0 : i32
    %c0_i32_1 = arith.constant 0 : i32
    return %c0_i32, %c0_i32_0 : i32, i32
  }
  func.func @transform_3(%arg0: i32, %arg1: i32) -> (i32, i32, i32) {
    %c0_i32 = arith.constant 0 : i32
    %c0_i32_0 = arith.constant 0 : i32
    return %arg0, %c0_i32, %arg1 : i32, i32, i32
  }
}

</mosaic_0001>

<llo_original>
// kernel: tpu_custom_call.1
$region0: #{tpu_custom_call.1}
  #allocation0 [shape = 'u32[]', space=smem, size = 0x4, offset = 0x4, fixed_abs, tag = 'smem constant byte address 0x4 - core index']
  #allocation1 [shape = 'u32[144,128]{1,0:T(1,128)}', space=vmem, size = 0x12000, scoped, tag = 'internal scratch']
  %s0 = inlined_call_operand.hbm [shape: f32[2,8,256], index: 0, kind: input, shape index: {}]
  %s1 = inlined_call_operand.hbm [shape: f32[3,8,8], index: 1, kind: input, shape index: {}]
  %s2 = inlined_call_operand.vmem [shape: f32[8,1], index: 2, kind: input, shape index: {}]
  %s3 = inlined_call_operand.hbm [shape: f32[2,8,128], index: 3, kind: output, shape index: {}]
  %s4 = sld [smem:[#allocation0]]
  $region53: #{tpu_custom_call.1} parent=0
    _
  %s6 = ssub.s32 1, %s4
  %s7 = scalar_select 0, %s6, %s4
  $region1: #{tpu_custom_call.1} parent=0
    #allocation2 [shape = 'u8[16384]{0}', space=vmem, size = 0x4000, scoped, tag = 'input window, operand 0']
    #allocation3 [shape = 's32[2]{0}', space=sflag, size = 0x8, scoped, tag = 'scoped memory for tpu_custom_call.1']
    #allocation4 [shape = 's32[2]{0}', space=sflag, size = 0x8, scoped, tag = 'scoped memory for tpu_custom_call.1']
    #allocation5 [shape = 'u8[12288]{0}', space=vmem, size = 0x3000, scoped, tag = 'input window, operand 1, single buffered']
    #allocation6 [shape = 's32[1]{0}', space=sflag, size = 0x4, scoped, tag = 'scoped memory for tpu_custom_call.1']
    #allocation7 [shape = 'u8[8192]{0}', space=vmem, size = 0x2000, scoped, tag = 'output window, operand 0']
    %8 = vsyncpa [#allocation3], 0
    %s9 = scalar_lea.sflag [#allocation3], 1
    %10 = vsyncpa %s9, 0
    %11 = vsyncpa [#allocation6], 0
    %12 = vsyncpa [#allocation4], 0
    %s13 = scalar_lea.sflag [#allocation4], 1
    %14 = vsyncpa %s13, 0
    loop: start=0, step=1, limit=4
    $region2: #{tpu_custom_call.1} parent=1 // loop_pre_header
      _
    $region3: #{tpu_custom_call.1} parent=1 // loop_header
      %s16 = sphi 0, %s20
      %p17 = scmp.ge.s32.totalorder %s16, 4
      %s23 = sphi 0, %s35
      %s24 = sphi 0, %s31
      %s25 = sphi 0, %s23
      %s26 = sphi 0, %s24
      %s27 = sphi 0, %s25
      %s28 = sphi 0, %s26
      %s38 = sphi 0, %s40
      %s41 = sphi 0, %s38
      %s42 = sphi 0, %s41
      %s58 = sphi 0, %s42
      %s62 = sphi 0, %s62
      %s64 = sphi 0, %s62
      %s65 = sphi 0, %s64
      %s79 = sphi 0, %s65
      %s83 = sphi 0, %s83
      %s85 = sphi 0, %s83
      %s86 = sphi 0, %s85
      %s100 = sphi 0, %s86
      %s108 = sphi 0, %s110
      %s111 = sphi 0, %s108
      %s112 = sphi 0, %s111
      %s128 = sphi 0, %s112
    $region4: #{tpu_custom_call.1} parent=1 // loop_header_branch
      %19 = sbr.rel (%p17) target = $region8
    $region5: #{tpu_custom_call.1} parent=1 // loop_body
      %s21 = ssub.s32 %s16, 1
      %s22 = ssub.s32 %s16, 2
      %s29 = sadd.s32 1, %s24
      %p30 = scmp.ge.s32.totalorder %s29, 1
      %s31 = scalar_select %p30, 0, %s29
      %s32 = sadd.s32 1, %s23
      %s33 = scalar_select %p30, %s32, %s23
      %p34 = scmp.ge.s32.totalorder %s33, 2
      %s35 = scalar_select %p34, 0, %s33
      %s36 = ssub.s32 %s23, %s35
      %p37 = scmp.eq.s32.totalorder %s36, 0
      %s39 = sadd.s32 %s38, 1
      %s40 = scalar_select %p37, %s38, %s39
      %p43 = pneg %p37
      %p44 = scmp.eq.s32.totalorder %s16, 1
      %p45 = por %p43, %p44
      %p46 = scmp.ne.s32.totalorder %s38, %s41
      %p47 = scmp.eq.s32.totalorder %s16, 0
      %p48 = por %p46, %p47
      %p49 = scmp.ne.s32.totalorder %s38, %s41
      %p50 = scmp.eq.s32.totalorder %s21, 1
      %p51 = por %p49, %p50
      %p52 = scmp.ne.s32.totalorder %s41, %s42
      %p53 = scmp.eq.s32.totalorder %s21, 0
      %p54 = por %p52, %p53
      %p55 = scmp.ne.s32.totalorder %s41, %s42
      %p56 = scmp.eq.s32.totalorder %s22, 1
      %p57 = por %p55, %p56
      %p59 = scmp.ne.s32.totalorder %s42, %s58
      %p60 = scmp.eq.s32.totalorder %s22, 0
      %p61 = por %p59, %p60
      %s63 = sadd.s32 %s62, 1
      %p66 = scmp.eq.s32.totalorder %s16, 1
      %p67 = scmp.ne.s32.totalorder %s62, %s64
      %p68 = scmp.eq.s32.totalorder %s16, 0
      %p69 = por %p67, %p68
      %p70 = scmp.ne.s32.totalorder %s62, %s64
      %p71 = scmp.eq.s32.totalorder %s21, 1
      %p72 = por %p70, %p71
      %p73 = scmp.ne.s32.totalorder %s64, %s65
      %p74 = scmp.eq.s32.totalorder %s21, 0
      %p75 = por %p73, %p74
      %p76 = scmp.ne.s32.totalorder %s64, %s65
      %p77 = scmp.eq.s32.totalorder %s22, 1
      %p78 = por %p76, %p77
      %p80 = scmp.ne.s32.totalorder %s65, %s79
      %p81 = scmp.eq.s32.totalorder %s22, 0
      %p82 = por %p80, %p81
      %s84 = sadd.s32 %s83, 1
      %p87 = scmp.eq.s32.totalorder %s16, 1
      %p88 = scmp.ne.s32.totalorder %s83, %s85
      %p89 = scmp.eq.s32.totalorder %s16, 0
      %p90 = por %p88, %p89
      %p91 = scmp.ne.s32.totalorder %s83, %s85
      %p92 = scmp.eq.s32.totalorder %s21, 1
      %p93 = por %p91, %p92
      %p94 = scmp.ne.s32.totalorder %s85, %s86
      %p95 = scmp.eq.s32.totalorder %s21, 0
      %p96 = por %p94, %p95
      %p97 = scmp.ne.s32.totalorder %s85, %s86
      %p98 = scmp.eq.s32.totalorder %s22, 1
      %p99 = por %p97, %p98
      %p101 = scmp.ne.s32.totalorder %s86, %s100
      %p102 = scmp.eq.s32.totalorder %s22, 0
      %p103 = por %p101, %p102
      %s104 = ssub.s32 %s23, %s35
      %s105 = ssub.s32 %s24, %s31
      %s106 = sor.u32 %s104, %s105
      %p107 = scmp.eq.s32.totalorder %s106, 0
      %s109 = sadd.s32 %s108, 1
      %s110 = scalar_select %p107, %s108, %s109
      %p113 = pneg %p107
      %p114 = scmp.eq.s32.totalorder %s16, 1
      %p115 = por %p113, %p114
      %p116 = scmp.ne.s32.totalorder %s108, %s111
      %p117 = scmp.eq.s32.totalorder %s16, 0
      %p118 = por %p116, %p117
      %p119 = scmp.ne.s32.totalorder %s108, %s111
      %p120 = scmp.eq.s32.totalorder %s21, 1
      %p121 = por %p119, %p120
      %p122 = scmp.ne.s32.totalorder %s111, %s112
      %p123 = scmp.eq.s32.totalorder %s21, 0
      %p124 = por %p122, %p123
      %p125 = scmp.ne.s32.totalorder %s111, %s112
      %p126 = scmp.eq.s32.totalorder %s22, 1
      %p127 = por %p125, %p126
      %p129 = scmp.ne.s32.totalorder %s112, %s128
      %p130 = scmp.eq.s32.totalorder %s22, 0
      %p131 = por %p129, %p130
      %p132 = scmp.le.s32.totalorder 1, %s16
      %p133 = scmp.lt.s32.totalorder %s16, 3
      %p134 = pnand %p132, %p133
      %p135 = pneg %p134
      // Predicated region
      $region9: #{tpu_custom_call.1} parent=5 // pred_check
        _
      $region10: #{tpu_custom_call.1} parent=5 // pred_check_branch
        %137 = sbr.rel (%p134) target = $region12
      $region11: #{tpu_custom_call.1} parent=5 // pred_region
        %s138 = ssub.s32 %s16, 1
        // Predicated region
        $region13: #{tpu_custom_call.1} parent=11 // pred_check
          %p139 = pneg %p75
        $region14: #{tpu_custom_call.1} parent=11 // pred_check_branch
          %141 = sbr.rel (%p139) target = $region16
        $region15: #{tpu_custom_call.1} parent=11 // pred_region
          %s143 = ssub.s32 384, 384
          %144 = vsyncadd [#allocation6], %s143
          %s145 = sshll.u32 [#allocation5], 4
          %s146 = int_to_ptr.vmem [resolvable:$true] %s145
          %151 = dma.hbm_to_vmem [thread:$0]  %s1, 384, %s146, [#allocation6], 128, 128, 8
        $region16: #{tpu_custom_call.1} parent=11 // pred_fallthru
          _
        // Predicated region
        $region17: #{tpu_custom_call.1} parent=11 // pred_check
          %p152 = pneg %p96
        $region18: #{tpu_custom_call.1} parent=11 // pred_check_branch
          %154 = sbr.rel (%p152) target = $region20
        $region19: #{tpu_custom_call.1} parent=11 // pred_region
          _
        $region20: #{tpu_custom_call.1} parent=11 // pred_fallthru
          _
      $region12: #{tpu_custom_call.1} parent=5 // pred_fallthru
        _
      %p155 = scmp.lt.s32.totalorder %s16, 2
      // Predicated region
      $region21: #{tpu_custom_call.1} parent=5 // pred_check
        %p156 = pneg %p155
      $region22: #{tpu_custom_call.1} parent=5 // pred_check_branch
        %158 = sbr.rel (%p156) target = $region24
      $region23: #{tpu_custom_call.1} parent=5 // pred_region
        // Predicated region
        $region25: #{tpu_custom_call.1} parent=23 // pred_check
          %p159 = pneg %p48
        $region26: #{tpu_custom_call.1} parent=23 // pred_check_branch
          %161 = sbr.rel (%p159) target = $region28
        $region27: #{tpu_custom_call.1} parent=23 // pred_region
          %s162 = sand.u32 %s38, 1
          %s163 = scalar_lea.sflag [#allocation3], %s162
          %s164 = sand.u32 %s38, 1
          %s165 = smul.addr %s164, 16
          %s166 = scalar_lea.vmem [#allocation2], %s165
          %s168 = ssub.s32 256, 256
          %169 = vsyncadd %s163, %s168
          %s170 = smul.addr %s23, 2
          %s171 = smul.addr %s170, 128
          %s172 = scalar_lea.hbm %s0, %s171
          %s174 = sshll.u32 %s166, 4
          %s175 = int_to_ptr.vmem [resolvable:$true] %s174
          %177 = dma.hbm_to_vmem [thread:$0]  %s172, 256, %s175, %s163
        $region28: #{tpu_custom_call.1} parent=23 // pred_fallthru
          _
      $region24: #{tpu_custom_call.1} parent=5 // pred_fallthru
        _
      %p178 = scmp.le.s32.totalorder 1, %s16
      %p179 = scmp.lt.s32.totalorder %s16, 3
      %p180 = pnand %p178, %p179
      %p181 = pneg %p180
      // Predicated region
      $region29: #{tpu_custom_call.1} parent=5 // pred_check
        _
      $region30: #{tpu_custom_call.1} parent=5 // pred_check_branch
        %183 = sbr.rel (%p180) target = $region32
      $region31: #{tpu_custom_call.1} parent=5 // pred_region
        %s184 = ssub.s32 %s16, 1
        %s185 = sand.u32 %s41, 1
        %s186 = scalar_lea.sflag [#allocation3], %s185
        %s187 = sand.u32 %s41, 1
        %s188 = smul.addr %s187, 16
        %s189 = scalar_lea.vmem [#allocation2], %s188
        // Predicated region
        $region33: #{tpu_custom_call.1} parent=31 // pred_check
          %p190 = pneg %p54
        $region34: #{tpu_custom_call.1} parent=31 // pred_check_branch
          %192 = sbr.rel (%p190) target = $region36
        $region35: #{tpu_custom_call.1} parent=31 // pred_region
          %193 = dma.done %s186, 256
        $region36: #{tpu_custom_call.1} parent=31 // pred_fallthru
          _
        // Predicated region
        $region37: #{tpu_custom_call.1} parent=31 // pred_check
          %p194 = pneg %p75
        $region38: #{tpu_custom_call.1} parent=31 // pred_check_branch
          %196 = sbr.rel (%p194) target = $region40
        $region39: #{tpu_custom_call.1} parent=31 // pred_region
          %197 = dma.done [#allocation6], 384
        $region40: #{tpu_custom_call.1} parent=31 // pred_fallthru
          _
        %s198 = sand.u32 %s41, 1
        %s199 = scalar_lea.sflag [#allocation3], %s198
        %s200 = sand.u32 %s41, 1
        %s201 = smul.addr %s200, 16
        %s202 = scalar_lea.vmem [#allocation2], %s201
        %p203 = pneg %p54
        %p204 = pneg %p51
        %p205 = pneg %p75
        %p206 = pneg %p72
        %p207 = pneg %p96
        %p208 = pneg %p93
        %p209 = pneg %p124
        %p210 = pneg %p121
        %s211 = sand.u32 %s111, 1
        %s212 = scalar_lea.sflag [#allocation4], %s211
        %s213 = sand.u32 %s111, 1
        %s214 = smul.addr %s213, 8
        %s215 = scalar_lea.vmem [#allocation7], %s214
        %v216 = vld [vmem:[#allocation5] sm:$0xff]
        %s217 = scalar_lea.vmem [#allocation5], 8
        %v218 = vld [vmem:[%s217] sm:$0xff]
        %s219 = scalar_lea.vmem [#allocation5], 16
        %v220 = vld [vmem:[%s219] sm:$0xff]
        %v221 = vld [vmem:[%s2] sm:$0xff]
        %223 = vset.pattern.permute.xlu0 0
        %224 = vperm.xlu0 %223, %v221
        %v225 = vpop.permute.xlu0 %224
        %s227 = smul.u32 %s26, 128
        %s228 = sshra.s32 %s227, 7
        %s229 = sand.u32 %s227, 127
        %s230 = smul.addr %s228, 8
        %s231 = scalar_lea.vmem %s189, %s230 [#allocation2]
        %v232 = vld [vmem:[%s231] sm:$0xff]
        %v233 = vld [vmem:[%s231 + $0x8] sm:$0xff]
        %vm234 = vcmask 64512
        %v236 = vsel %vm234, %v216, 0
        %238 = vmatprep.subr.mxu0 0.0
        %v239 = vand.u32 %v232, 4294901760
        %240 = vmatpush1.msra.mxu0 %v239
        %241 = vmatprep.subr.mxu0 0.0
        %242 = vmatpush1.msra.mxu0 0.0
        %243 = vmatprep.subr.mxu0 0.0
        %244 = vmatpush1.msra.mxu0 0.0
        %245 = vmatprep.subr.mxu0 0.0
        %246 = vmatpush1.msra.mxu0 0.0
        %247 = vmatprep.subr.mxu0 0.0
        %248 = vmatpush1.msra.mxu0 0.0
        %249 = vmatprep.subr.mxu0 0.0
        %250 = vmatpush1.msra.mxu0 0.0
        %251 = vmatprep.subr.mxu0 0.0
        %252 = vmatpush1.msra.mxu0 0.0
        %253 = vmatprep.subr.mxu0 0.0
        %254 = vmatpush1.msra.mxu0 0.0
        %255 = vmatprep.subr.mxu0 0.0
        %256 = vmatpush1.msra.mxu0 0.0
        %257 = vmatprep.subr.mxu0 0.0
        %258 = vmatpush1.msra.mxu0 0.0
        %259 = vmatprep.subr.mxu0 0.0
        %260 = vmatpush1.msra.mxu0 0.0
        %261 = vmatprep.subr.mxu0 0.0
        %262 = vmatpush1.msra.mxu0 0.0
        %263 = vmatprep.subr.mxu0 0.0
        %264 = vmatpush1.msra.mxu0 0.0
        %265 = vmatprep.subr.mxu0 0.0
        %266 = vmatpush1.msra.mxu0 0.0
        %267 = vmatprep.subr.mxu0 0.0
        %268 = vmatpush1.msra.mxu0 0.0
        %269 = vmatprep.subr.mxu0 0.0
        %270 = vmatpush1.msra.mxu0 0.0
        %271 = vmatprep.subr.mxu0 0.0
        %272 = vmatpush1.msra.mxu0 0.0
        %273 = vmatprep.subr.mxu0 0.0
        %274 = vmatpush1.msra.mxu0 0.0
        %275 = vmatprep.subr.mxu0 0.0
        %276 = vmatpush1.msra.mxu0 0.0
        %277 = vmatprep.subr.mxu0 0.0
        %278 = vmatpush1.msra.mxu0 0.0
        %279 = vmatprep.subr.mxu0 0.0
        %280 = vmatpush1.msra.mxu0 0.0
        %281 = vmatprep.subr.mxu0 0.0
        %282 = vmatpush1.msra.mxu0 0.0
        %283 = vmatprep.subr.mxu0 0.0
        %284 = vmatpush1.msra.mxu0 0.0
        %285 = vmatprep.subr.mxu0 0.0
        %286 = vmatpush1.msra.mxu0 0.0
        %287 = vmatprep.subr.mxu0 0.0
        %288 = vmatpush1.msra.mxu0 0.0
        %289 = vmatprep.subr.mxu0 0.0
        %290 = vmatpush1.msra.mxu0 0.0
        %291 = vmatprep.subr.mxu0 0.0
        %292 = vmatpush1.msra.mxu0 0.0
        %293 = vmatprep.subr.mxu0 0.0
        %294 = vmatpush1.msra.mxu0 0.0
        %295 = vmatprep.subr.mxu0 0.0
        %296 = vmatpush1.msra.mxu0 0.0
        %297 = vmatprep.subr.mxu0 0.0
        %298 = vmatpush1.msra.mxu0 0.0
        %299 = vmatprep.subr.mxu0 0.0
        %300 = vmatpush1.msra.mxu0 0.0
        %301 = vmatprep.subr.mxu0 0.0
        %302 = vmatpush1.msra.mxu0 0.0
        %303 = vmatprep.mubr.f32.mxu0 0.0
        %v304 = vand.u32 %v236, 4294901760
        %v305 = vsub.f32 %v236, %v304
        %v306 = vand.u32 %v305, 4294901760
        %v307 = vsub.f32 %v305, %v306
        %v308 = vand.u32 %v307, 4294901760
        %309 = vmatmul.mubr.f32.gmra.mrb[0].mxu0 %v308
        %v310 = vpop.f32.mrb[0].mxu0
        %v311 = vadd.f32 0.0, %v310
        %v312 = vpop.f32.mrb[0].mxu0
        %313 = vdwg.mxu0
        %314 = vmatprep.subr.mxu0 0.0
        %v315 = vand.u32 %v232, 4294901760
        %v316 = vsub.f32 %v232, %v315
        %v317 = vand.u32 %v316, 4294901760
        %v318 = vsub.f32 %v316, %v317
        %v319 = vand.u32 %v318, 4294901760
        %320 = vmatpush1.msra.mxu0 %v319
        %321 = vmatprep.subr.mxu0 0.0
        %322 = vmatpush1.msra.mxu0 0.0
        %323 = vmatprep.subr.mxu0 0.0
        %324 = vmatpush1.msra.mxu0 0.0
        %325 = vmatprep.subr.mxu0 0.0
        %326 = vmatpush1.msra.mxu0 0.0
        %327 = vmatprep.subr.mxu0 0.0
        %328 = vmatpush1.msra.mxu0 0.0
        %329 = vmatprep.subr.mxu0 0.0
        %330 = vmatpush1.msra.mxu0 0.0
        %331 = vmatprep.subr.mxu0 0.0
        %332 = vmatpush1.msra.mxu0 0.0
        %333 = vmatprep.subr.mxu0 0.0
        %334 = vmatpush1.msra.mxu0 0.0
        %335 = vmatprep.subr.mxu0 0.0
        %336 = vmatpush1.msra.mxu0 0.0
        %337 = vmatprep.subr.mxu0 0.0
        %338 = vmatpush1.msra.mxu0 0.0
        %339 = vmatprep.subr.mxu0 0.0
        %340 = vmatpush1.msra.mxu0 0.0
        %341 = vmatprep.subr.mxu0 0.0
        %342 = vmatpush1.msra.mxu0 0.0
        %343 = vmatprep.subr.mxu0 0.0
        %344 = vmatpush1.msra.mxu0 0.0
        %345 = vmatprep.subr.mxu0 0.0
        %346 = vmatpush1.msra.mxu0 0.0
        %347 = vmatprep.subr.mxu0 0.0
        %348 = vmatpush1.msra.mxu0 0.0
        %349 = vmatprep.subr.mxu0 0.0
        %350 = vmatpush1.msra.mxu0 0.0
        %351 = vmatprep.subr.mxu0 0.0
        %352 = vmatpush1.msra.mxu0 0.0
        %353 = vmatprep.subr.mxu0 0.0
        %354 = vmatpush1.msra.mxu0 0.0
        %355 = vmatprep.subr.mxu0 0.0
        %356 = vmatpush1.msra.mxu0 0.0
        %357 = vmatprep.subr.mxu0 0.0
        %358 = vmatpush1.msra.mxu0 0.0
        %359 = vmatprep.subr.mxu0 0.0
        %360 = vmatpush1.msra.mxu0 0.0
        %361 = vmatprep.subr.mxu0 0.0
        %362 = vmatpush1.msra.mxu0 0.0
        %363 = vmatprep.subr.mxu0 0.0
        %364 = vmatpush1.msra.mxu0 0.0
        %365 = vmatprep.subr.mxu0 0.0
        %366 = vmatpush1.msra.mxu0 0.0
        %367 = vmatprep.subr.mxu0 0.0
        %368 = vmatpush1.msra.mxu0 0.0
        %369 = vmatprep.subr.mxu0 0.0
        %370 = vmatpush1.msra.mxu0 0.0
        %371 = vmatprep.subr.mxu0 0.0
        %372 = vmatpush1.msra.mxu0 0.0
        %373 = vmatprep.subr.mxu0 0.0
        %374 = vmatpush1.msra.mxu0 0.0
        %375 = vmatprep.subr.mxu0 0.0
        %376 = vmatpush1.msra.mxu0 0.0
        %377 = vmatprep.subr.mxu0 0.0
        %378 = vmatpush1.msra.mxu0 0.0
        %379 = vmatprep.subr.mxu0 0.0
        %380 = vmatpush1.msra.mxu0 0.0
        %381 = vmatprep.subr.mxu0 0.0
        %382 = vmatpush1.msra.mxu0 0.0
        %383 = vmatprep.mubr.f32.mxu0 0.0
        %v384 = vand.u32 %v236, 4294901760
        %385 = vmatmul.mubr.f32.gmra.mrb[0].mxu0 %v384
        %v386 = vpop.f32.mrb[0].mxu0
        %v387 = vadd.f32 %v311, %v386
        %v388 = vpop.f32.mrb[0].mxu0
        %389 = vdwg.mxu0
        %390 = vmatprep.subr.mxu0 0.0
        %v391 = vand.u32 %v232, 4294901760
        %v392 = vsub.f32 %v232, %v391
        %393 = vmatpush1.msra.mxu0 %v392
        %394 = vmatprep.subr.mxu0 0.0
        %395 = vmatpush1.msra.mxu0 0.0
        %396 = vmatprep.subr.mxu0 0.0
        %397 = vmatpush1.msra.mxu0 0.0
        %398 = vmatprep.subr.mxu0 0.0
        %399 = vmatpush1.msra.mxu0 0.0
        %400 = vmatprep.subr.mxu0 0.0
        %401 = vmatpush1.msra.mxu0 0.0
        %402 = vmatprep.subr.mxu0 0.0
        %403 = vmatpush1.msra.mxu0 0.0
        %404 = vmatprep.subr.mxu0 0.0
        %405 = vmatpush1.msra.mxu0 0.0
        %406 = vmatprep.subr.mxu0 0.0
        %407 = vmatpush1.msra.mxu0 0.0
        %408 = vmatprep.subr.mxu0 0.0
        %409 = vmatpush1.msra.mxu0 0.0
        %410 = vmatprep.subr.mxu0 0.0
        %411 = vmatpush1.msra.mxu0 0.0
        %412 = vmatprep.subr.mxu0 0.0
        %413 = vmatpush1.msra.mxu0 0.0
        %414 = vmatprep.subr.mxu0 0.0
        %415 = vmatpush1.msra.mxu0 0.0
        %416 = vmatprep.subr.mxu0 0.0
        %417 = vmatpush1.msra.mxu0 0.0
        %418 = vmatprep.subr.mxu0 0.0
        %419 = vmatpush1.msra.mxu0 0.0
        %420 = vmatprep.subr.mxu0 0.0
        %421 = vmatpush1.msra.mxu0 0.0
        %422 = vmatprep.subr.mxu0 0.0
        %423 = vmatpush1.msra.mxu0 0.0
        %424 = vmatprep.subr.mxu0 0.0
        %425 = vmatpush1.msra.mxu0 0.0
        %426 = vmatprep.subr.mxu0 0.0
        %427 = vmatpush1.msra.mxu0 0.0
        %428 = vmatprep.subr.mxu0 0.0
        %429 = vmatpush1.msra.mxu0 0.0
        %430 = vmatprep.subr.mxu0 0.0
        %431 = vmatpush1.msra.mxu0 0.0
        %432 = vmatprep.subr.mxu0 0.0
        %433 = vmatpush1.msra.mxu0 0.0
        %434 = vmatprep.subr.mxu0 0.0
        %435 = vmatpush1.msra.mxu0 0.0
        %436 = vmatprep.subr.mxu0 0.0
        %437 = vmatpush1.msra.mxu0 0.0
        %438 = vmatprep.subr.mxu0 0.0
        %439 = vmatpush1.msra.mxu0 0.0
        %440 = vmatprep.subr.mxu0 0.0
        %441 = vmatpush1.msra.mxu0 0.0
        %442 = vmatprep.subr.mxu0 0.0
        %443 = vmatpush1.msra.mxu0 0.0
        %444 = vmatprep.subr.mxu0 0.0
        %445 = vmatpush1.msra.mxu0 0.0
        %446 = vmatprep.subr.mxu0 0.0
        %447 = vmatpush1.msra.mxu0 0.0
        %448 = vmatprep.subr.mxu0 0.0
        %449 = vmatpush1.msra.mxu0 0.0
        %450 = vmatprep.subr.mxu0 0.0
        %451 = vmatpush1.msra.mxu0 0.0
        %452 = vmatprep.subr.mxu0 0.0
        %453 = vmatpush1.msra.mxu0 0.0
        %454 = vmatprep.subr.mxu0 0.0
        %455 = vmatpush1.msra.mxu0 0.0
        %456 = vmatprep.mubr.f32.mxu0 0.0
        %v457 = vand.u32 %v236, 4294901760
        %v458 = vsub.f32 %v236, %v457
        %459 = vmatmul.mubr.f32.gmra.mrb[0].mxu0 %v458
        %v460 = vpop.f32.mrb[0].mxu0
        %v461 = vadd.f32 %v387, %v460
        %v462 = vpop.f32.mrb[0].mxu0
        %463 = vdwg.mxu0
        %464 = vmatprep.subr.mxu0 0.0
        %v465 = vand.u32 %v232, 4294901760
        %466 = vmatpush1.msra.mxu0 %v465
        %467 = vmatprep.subr.mxu0 0.0
        %468 = vmatpush1.msra.mxu0 0.0
        %469 = vmatprep.subr.mxu0 0.0
        %470 = vmatpush1.msra.mxu0 0.0
        %471 = vmatprep.subr.mxu0 0.0
        %472 = vmatpush1.msra.mxu0 0.0
        %473 = vmatprep.subr.mxu0 0.0
        %474 = vmatpush1.msra.mxu0 0.0
        %475 = vmatprep.subr.mxu0 0.0
        %476 = vmatpush1.msra.mxu0 0.0
        %477 = vmatprep.subr.mxu0 0.0
        %478 = vmatpush1.msra.mxu0 0.0
        %479 = vmatprep.subr.mxu0 0.0
        %480 = vmatpush1.msra.mxu0 0.0
        %481 = vmatprep.subr.mxu0 0.0
        %482 = vmatpush1.msra.mxu0 0.0
        %483 = vmatprep.subr.mxu0 0.0
        %484 = vmatpush1.msra.mxu0 0.0
        %485 = vmatprep.subr.mxu0 0.0
        %486 = vmatpush1.msra.mxu0 0.0
        %487 = vmatprep.subr.mxu0 0.0
        %488 = vmatpush1.msra.mxu0 0.0
        %489 = vmatprep.subr.mxu0 0.0
        %490 = vmatpush1.msra.mxu0 0.0
        %491 = vmatprep.subr.mxu0 0.0
        %492 = vmatpush1.msra.mxu0 0.0
        %493 = vmatprep.subr.mxu0 0.0
        %494 = vmatpush1.msra.mxu0 0.0
        %495 = vmatprep.subr.mxu0 0.0
        %496 = vmatpush1.msra.mxu0 0.0
        %497 = vmatprep.subr.mxu0 0.0
        %498 = vmatpush1.msra.mxu0 0.0
        %499 = vmatprep.subr.mxu0 0.0
        %500 = vmatpush1.msra.mxu0 0.0
        %501 = vmatprep.subr.mxu0 0.0
        %502 = vmatpush1.msra.mxu0 0.0
        %503 = vmatprep.subr.mxu0 0.0
        %504 = vmatpush1.msra.mxu0 0.0
        %505 = vmatprep.subr.mxu0 0.0
        %506 = vmatpush1.msra.mxu0 0.0
        %507 = vmatprep.subr.mxu0 0.0
        %508 = vmatpush1.msra.mxu0 0.0
        %509 = vmatprep.subr.mxu0 0.0
        %510 = vmatpush1.msra.mxu0 0.0
        %511 = vmatprep.subr.mxu0 0.0
        %512 = vmatpush1.msra.mxu0 0.0
        %513 = vmatprep.subr.mxu0 0.0
        %514 = vmatpush1.msra.mxu0 0.0
        %515 = vmatprep.subr.mxu0 0.0
        %516 = vmatpush1.msra.mxu0 0.0
        %517 = vmatprep.subr.mxu0 0.0
        %518 = vmatpush1.msra.mxu0 0.0
        %519 = vmatprep.subr.mxu0 0.0
        %520 = vmatpush1.msra.mxu0 0.0
        %521 = vmatprep.subr.mxu0 0.0
        %522 = vmatpush1.msra.mxu0 0.0
        %523 = vmatprep.subr.mxu0 0.0
        %524 = vmatpush1.msra.mxu0 0.0
        %525 = vmatprep.subr.mxu0 0.0
        %526 = vmatpush1.msra.mxu0 0.0
        %527 = vmatprep.subr.mxu0 0.0
        %528 = vmatpush1.msra.mxu0 0.0
        %529 = vmatprep.mubr.f32.mxu0 0.0
        %v530 = vand.u32 %v236, 4294901760
        %v531 = vsub.f32 %v236, %v530
        %v532 = vand.u32 %v531, 4294901760
        %533 = vmatmul.mubr.f32.gmra.mrb[0].mxu0 %v532
        %v534 = vpop.f32.mrb[0].mxu0
        %v535 = vadd.f32 %v461, %v534
        %v536 = vpop.f32.mrb[0].mxu0
        %537 = vdwg.mxu0
        %538 = vmatprep.subr.mxu0 0.0
        %v539 = vand.u32 %v232, 4294901760
        %v540 = vsub.f32 %v232, %v539
        %v541 = vand.u32 %v540, 4294901760
        %542 = vmatpush1.msra.mxu0 %v541
        %543 = vmatprep.subr.mxu0 0.0
        %544 = vmatpush1.msra.mxu0 0.0
        %545 = vmatprep.subr.mxu0 0.0
        %546 = vmatpush1.msra.mxu0 0.0
        %547 = vmatprep.subr.mxu0 0.0
        %548 = vmatpush1.msra.mxu0 0.0
        %549 = vmatprep.subr.mxu0 0.0
        %550 = vmatpush1.msra.mxu0 0.0
        %551 = vmatprep.subr.mxu0 0.0
        %552 = vmatpush1.msra.mxu0 0.0
        %553 = vmatprep.subr.mxu0 0.0
        %554 = vmatpush1.msra.mxu0 0.0
        %555 = vmatprep.subr.mxu0 0.0
        %556 = vmatpush1.msra.mxu0 0.0
        %557 = vmatprep.subr.mxu0 0.0
        %558 = vmatpush1.msra.mxu0 0.0
        %559 = vmatprep.subr.mxu0 0.0
        %560 = vmatpush1.msra.mxu0 0.0
        %561 = vmatprep.subr.mxu0 0.0
        %562 = vmatpush1.msra.mxu0 0.0
        %563 = vmatprep.subr.mxu0 0.0
        %564 = vmatpush1.msra.mxu0 0.0
        %565 = vmatprep.subr.mxu0 0.0
        %566 = vmatpush1.msra.mxu0 0.0
        %567 = vmatprep.subr.mxu0 0.0
        %568 = vmatpush1.msra.mxu0 0.0
        %569 = vmatprep.subr.mxu0 0.0
        %570 = vmatpush1.msra.mxu0 0.0
        %571 = vmatprep.subr.mxu0 0.0
        %572 = vmatpush1.msra.mxu0 0.0
        %573 = vmatprep.subr.mxu0 0.0
        %574 = vmatpush1.msra.mxu0 0.0
        %575 = vmatprep.subr.mxu0 0.0
        %576 = vmatpush1.msra.mxu0 0.0
        %577 = vmatprep.subr.mxu0 0.0
        %578 = vmatpush1.msra.mxu0 0.0
        %579 = vmatprep.subr.mxu0 0.0
        %580 = vmatpush1.msra.mxu0 0.0
        %581 = vmatprep.subr.mxu0 0.0
        %582 = vmatpush1.msra.mxu0 0.0
        %583 = vmatprep.subr.mxu0 0.0
        %584 = vmatpush1.msra.mxu0 0.0
        %585 = vmatprep.subr.mxu0 0.0
        %586 = vmatpush1.msra.mxu0 0.0
        %587 = vmatprep.subr.mxu0 0.0
        %588 = vmatpush1.msra.mxu0 0.0
        %589 = vmatprep.subr.mxu0 0.0
        %590 = vmatpush1.msra.mxu0 0.0
        %591 = vmatprep.subr.mxu0 0.0
        %592 = vmatpush1.msra.mxu0 0.0
        %593 = vmatprep.subr.mxu0 0.0
        %594 = vmatpush1.msra.mxu0 0.0
        %595 = vmatprep.subr.mxu0 0.0
        %596 = vmatpush1.msra.mxu0 0.0
        %597 = vmatprep.subr.mxu0 0.0
        %598 = vmatpush1.msra.mxu0 0.0
        %599 = vmatprep.subr.mxu0 0.0
        %600 = vmatpush1.msra.mxu0 0.0
        %601 = vmatprep.subr.mxu0 0.0
        %602 = vmatpush1.msra.mxu0 0.0
        %603 = vmatprep.subr.mxu0 0.0
        %604 = vmatpush1.msra.mxu0 0.0
        %605 = vmatprep.mubr.f32.mxu0 0.0
        %v606 = vand.u32 %v236, 4294901760
        %607 = vmatmul.mubr.f32.gmra.mrb[0].mxu0 %v606
        %v608 = vpop.f32.mrb[0].mxu0
        %v609 = vadd.f32 %v535, %v608
        %v610 = vpop.f32.mrb[0].mxu0
        %611 = vdwg.mxu0
        %612 = vmatprep.subr.mxu0 0.0
        %v613 = vand.u32 %v232, 4294901760
        %614 = vmatpush1.msra.mxu0 %v613
        %615 = vmatprep.subr.mxu0 0.0
        %616 = vmatpush1.msra.mxu0 0.0
        %617 = vmatprep.subr.mxu0 0.0
        %618 = vmatpush1.msra.mxu0 0.0
        %619 = vmatprep.subr.mxu0 0.0
        %620 = vmatpush1.msra.mxu0 0.0
        %621 = vmatprep.subr.mxu0 0.0
        %622 = vmatpush1.msra.mxu0 0.0
        %623 = vmatprep.subr.mxu0 0.0
        %624 = vmatpush1.msra.mxu0 0.0
        %625 = vmatprep.subr.mxu0 0.0
        %626 = vmatpush1.msra.mxu0 0.0
        %627 = vmatprep.subr.mxu0 0.0
        %628 = vmatpush1.msra.mxu0 0.0
        %629 = vmatprep.subr.mxu0 0.0
        %630 = vmatpush1.msra.mxu0 0.0
        %631 = vmatprep.subr.mxu0 0.0
        %632 = vmatpush1.msra.mxu0 0.0
        %633 = vmatprep.subr.mxu0 0.0
        %634 = vmatpush1.msra.mxu0 0.0
        %635 = vmatprep.subr.mxu0 0.0
        %636 = vmatpush1.msra.mxu0 0.0
        %637 = vmatprep.subr.mxu0 0.0
        %638 = vmatpush1.msra.mxu0 0.0
        %639 = vmatprep.subr.mxu0 0.0
        %640 = vmatpush1.msra.mxu0 0.0
        %641 = vmatprep.subr.mxu0 0.0
        %642 = vmatpush1.msra.mxu0 0.0
        %643 = vmatprep.subr.mxu0 0.0
        %644 = vmatpush1.msra.mxu0 0.0
        %645 = vmatprep.subr.mxu0 0.0
        %646 = vmatpush1.msra.mxu0 0.0
        %647 = vmatprep.subr.mxu0 0.0
        %648 = vmatpush1.msra.mxu0 0.0
        %649 = vmatprep.subr.mxu0 0.0
        %650 = vmatpush1.msra.mxu0 0.0
        %651 = vmatprep.subr.mxu0 0.0
        %652 = vmatpush1.msra.mxu0 0.0
        %653 = vmatprep.subr.mxu0 0.0
        %654 = vmatpush1.msra.mxu0 0.0
        %655 = vmatprep.subr.mxu0 0.0
        %656 = vmatpush1.msra.mxu0 0.0
        %657 = vmatprep.subr.mxu0 0.0
        %658 = vmatpush1.msra.mxu0 0.0
        %659 = vmatprep.subr.mxu0 0.0
        %660 = vmatpush1.msra.mxu0 0.0
        %661 = vmatprep.subr.mxu0 0.0
        %662 = vmatpush1.msra.mxu0 0.0
        %663 = vmatprep.subr.mxu0 0.0
        %664 = vmatpush1.msra.mxu0 0.0
        %665 = vmatprep.subr.mxu0 0.0
        %666 = vmatpush1.msra.mxu0 0.0
        %667 = vmatprep.subr.mxu0 0.0
        %668 = vmatpush1.msra.mxu0 0.0
        %669 = vmatprep.subr.mxu0 0.0
        %670 = vmatpush1.msra.mxu0 0.0
        %671 = vmatprep.subr.mxu0 0.0
        %672 = vmatpush1.msra.mxu0 0.0
        %673 = vmatprep.subr.mxu0 0.0
        %674 = vmatpush1.msra.mxu0 0.0
        %675 = vmatprep.subr.mxu0 0.0
        %676 = vmatpush1.msra.mxu0 0.0
        %677 = vmatprep.mubr.f32.mxu0 0.0
        %v678 = vand.u32 %v236, 4294901760
        %679 = vmatmul.mubr.f32.gmra.mrb[0].mxu0 %v678
        %v680 = vpop.f32.mrb[0].mxu0
        %v681 = vadd.f32 %v609, %v680
        %v682 = vpop.f32.mrb[0].mxu0
        %683 = vdwg.mxu0
        %v684 = vadd.f32 %v225, %v681
        %687 = vrot.lane.b32.xlu0 %v232, 127
        %v688 = vpop.permute.xlu0 %687
        %689 = vrot.lane.b32.xlu0 %v233, 127
        %v690 = vpop.permute.xlu0 %689
        %vm691 = vcmask 1039360
        %v692 = vsel %vm691, %v688, %v690
        %v695 = vsel %vm234, %v218, 0
        %697 = vmatprep.subr.mxu0 0.0
        %v698 = vand.u32 %v692, 4294901760
        %699 = vmatpush1.msra.mxu0 %v698
        %700 = vmatprep.subr.mxu0 0.0
        %701 = vmatpush1.msra.mxu0 0.0
        %702 = vmatprep.subr.mxu0 0.0
        %703 = vmatpush1.msra.mxu0 0.0
        %704 = vmatprep.subr.mxu0 0.0
        %705 = vmatpush1.msra.mxu0 0.0
        %706 = vmatprep.subr.mxu0 0.0
        %707 = vmatpush1.msra.mxu0 0.0
        %708 = vmatprep.subr.mxu0 0.0
        %709 = vmatpush1.msra.mxu0 0.0
        %710 = vmatprep.subr.mxu0 0.0
        %711 = vmatpush1.msra.mxu0 0.0
        %712 = vmatprep.subr.mxu0 0.0
        %713 = vmatpush1.msra.mxu0 0.0
        %714 = vmatprep.subr.mxu0 0.0
        %715 = vmatpush1.msra.mxu0 0.0
        %716 = vmatprep.subr.mxu0 0.0
        %717 = vmatpush1.msra.mxu0 0.0
        %718 = vmatprep.subr.mxu0 0.0
        %719 = vmatpush1.msra.mxu0 0.0
        %720 = vmatprep.subr.mxu0 0.0
        %721 = vmatpush1.msra.mxu0 0.0
        %722 = vmatprep.subr.mxu0 0.0
        %723 = vmatpush1.msra.mxu0 0.0
        %724 = vmatprep.subr.mxu0 0.0
        %725 = vmatpush1.msra.mxu0 0.0
        %726 = vmatprep.subr.mxu0 0.0
        %727 = vmatpush1.msra.mxu0 0.0
        %728 = vmatprep.subr.mxu0 0.0
        %729 = vmatpush1.msra.mxu0 0.0
        %730 = vmatprep.subr.mxu0 0.0
        %731 = vmatpush1.msra.mxu0 0.0
        %732 = vmatprep.subr.mxu0 0.0
        %733 = vmatpush1.msra.mxu0 0.0
        %734 = vmatprep.subr.mxu0 0.0
        %735 = vmatpush1.msra.mxu0 0.0
        %736 = vmatprep.subr.mxu0 0.0
        %737 = vmatpush1.msra.mxu0 0.0
        %738 = vmatprep.subr.mxu0 0.0
        %739 = vmatpush1.msra.mxu0 0.0
        %740 = vmatprep.subr.mxu0 0.0
        %741 = vmatpush1.msra.mxu0 0.0
        %742 = vmatprep.subr.mxu0 0.0
        %743 = vmatpush1.msra.mxu0 0.0
        %744 = vmatprep.subr.mxu0 0.0
        %745 = vmatpush1.msra.mxu0 0.0
        %746 = vmatprep.subr.mxu0 0.0
        %747 = vmatpush1.msra.mxu0 0.0
        %748 = vmatprep.subr.mxu0 0.0
        %749 = vmatpush1.msra.mxu0 0.0
        %750 = vmatprep.subr.mxu0 0.0
        %751 = vmatpush1.msra.mxu0 0.0
        %752 = vmatprep.subr.mxu0 0.0
        %753 = vmatpush1.msra.mxu0 0.0
        %754 = vmatprep.subr.mxu0 0.0
        %755 = vmatpush1.msra.mxu0 0.0
        %756 = vmatprep.subr.mxu0 0.0
        %757 = vmatpush1.msra.mxu0 0.0
        %758 = vmatprep.subr.mxu0 0.0
        %759 = vmatpush1.msra.mxu0 0.0
        %760 = vmatprep.subr.mxu0 0.0
        %761 = vmatpush1.msra.mxu0 0.0
        %762 = vmatprep.mubr.f32.mxu0 0.0
        %v763 = vand.u32 %v695, 4294901760
        %v764 = vsub.f32 %v695, %v763
        %v765 = vand.u32 %v764, 4294901760
        %v766 = vsub.f32 %v764, %v765
        %v767 = vand.u32 %v766, 4294901760
        %768 = vmatmul.mubr.f32.gmra.mrb[0].mxu0 %v767
        %v769 = vpop.f32.mrb[0].mxu0
        %v770 = vadd.f32 0.0, %v769
        %v771 = vpop.f32.mrb[0].mxu0
        %772 = vdwg.mxu0
        %773 = vmatprep.subr.mxu0 0.0
        %v774 = vand.u32 %v692, 4294901760
        %v775 = vsub.f32 %v692, %v774
        %v776 = vand.u32 %v775, 4294901760
        %v777 = vsub.f32 %v775, %v776
        %v778 = vand.u32 %v777, 4294901760
        %779 = vmatpush1.msra.mxu0 %v778
        %780 = vmatprep.subr.mxu0 0.0
        %781 = vmatpush1.msra.mxu0 0.0
        %782 = vmatprep.subr.mxu0 0.0
        %783 = vmatpush1.msra.mxu0 0.0
        %784 = vmatprep.subr.mxu0 0.0
        %785 = vmatpush1.msra.mxu0 0.0
        %786 = vmatprep.subr.mxu0 0.0
        %787 = vmatpush1.msra.mxu0 0.0
        %788 = vmatprep.subr.mxu0 0.0
        %789 = vmatpush1.msra.mxu0 0.0
        %790 = vmatprep.subr.mxu0 0.0
        %791 = vmatpush1.msra.mxu0 0.0
        %792 = vmatprep.subr.mxu0 0.0
        %793 = vmatpush1.msra.mxu0 0.0
        %794 = vmatprep.subr.mxu0 0.0
        %795 = vmatpush1.msra.mxu0 0.0
        %796 = vmatprep.subr.mxu0 0.0
        %797 = vmatpush1.msra.mxu0 0.0
        %798 = vmatprep.subr.mxu0 0.0
        %799 = vmatpush1.msra.mxu0 0.0
        %800 = vmatprep.subr.mxu0 0.0
        %801 = vmatpush1.msra.mxu0 0.0
        %802 = vmatprep.subr.mxu0 0.0
        %803 = vmatpush1.msra.mxu0 0.0
        %804 = vmatprep.subr.mxu0 0.0
        %805 = vmatpush1.msra.mxu0 0.0
        %806 = vmatprep.subr.mxu0 0.0
        %807 = vmatpush1.msra.mxu0 0.0
        %808 = vmatprep.subr.mxu0 0.0
        %809 = vmatpush1.msra.mxu0 0.0
        %810 = vmatprep.subr.mxu0 0.0
        %811 = vmatpush1.msra.mxu0 0.0
        %812 = vmatprep.subr.mxu0 0.0
        %813 = vmatpush1.msra.mxu0 0.0
        %814 = vmatprep.subr.mxu0 0.0
        %815 = vmatpush1.msra.mxu0 0.0
        %816 = vmatprep.subr.mxu0 0.0
        %817 = vmatpush1.msra.mxu0 0.0
        %818 = vmatprep.subr.mxu0 0.0
        %819 = vmatpush1.msra.mxu0 0.0
        %820 = vmatprep.subr.mxu0 0.0
        %821 = vmatpush1.msra.mxu0 0.0
        %822 = vmatprep.subr.mxu0 0.0
        %823 = vmatpush1.msra.mxu0 0.0
        %824 = vmatprep.subr.mxu0 0.0
        %825 = vmatpush1.msra.mxu0 0.0
        %826 = vmatprep.subr.mxu0 0.0
        %827 = vmatpush1.msra.mxu0 0.0
        %828 = vmatprep.subr.mxu0 0.0
        %829 = vmatpush1.msra.mxu0 0.0
        %830 = vmatprep.subr.mxu0 0.0
        %831 = vmatpush1.msra.mxu0 0.0
        %832 = vmatprep.subr.mxu0 0.0
        %833 = vmatpush1.msra.mxu0 0.0
        %834 = vmatprep.subr.mxu0 0.0
        %835 = vmatpush1.msra.mxu0 0.0
        %836 = vmatprep.subr.mxu0 0.0
        %837 = vmatpush1.msra.mxu0 0.0
        %838 = vmatprep.subr.mxu0 0.0
        %839 = vmatpush1.msra.mxu0 0.0
        %840 = vmatprep.subr.mxu0 0.0
        %841 = vmatpush1.msra.mxu0 0.0
        %842 = vmatprep.mubr.f32.mxu0 0.0
        %v843 = vand.u32 %v695, 4294901760
        %844 = vmatmul.mubr.f32.gmra.mrb[0].mxu0 %v843
        %v845 = vpop.f32.mrb[0].mxu0
        %v846 = vadd.f32 %v770, %v845
        %v847 = vpop.f32.mrb[0].mxu0
        %848 = vdwg.mxu0
        %849 = vmatprep.subr.mxu0 0.0
        %v850 = vand.u32 %v692, 4294901760
        %v851 = vsub.f32 %v692, %v850
        %852 = vmatpush1.msra.mxu0 %v851
        %853 = vmatprep.subr.mxu0 0.0
        %854 = vmatpush1.msra.mxu0 0.0
        %855 = vmatprep.subr.mxu0 0.0
        %856 = vmatpush1.msra.mxu0 0.0
        %857 = vmatprep.subr.mxu0 0.0
        %858 = vmatpush1.msra.mxu0 0.0
        %859 = vmatprep.subr.mxu0 0.0
        %860 = vmatpush1.msra.mxu0 0.0
        %861 = vmatprep.subr.mxu0 0.0
        %862 = vmatpush1.msra.mxu0 0.0
        %863 = vmatprep.subr.mxu0 0.0
        %864 = vmatpush1.msra.mxu0 0.0
        %865 = vmatprep.subr.mxu0 0.0
        %866 = vmatpush1.msra.mxu0 0.0
        %867 = vmatprep.subr.mxu0 0.0
        %868 = vmatpush1.msra.mxu0 0.0
        %869 = vmatprep.subr.mxu0 0.0
        %870 = vmatpush1.msra.mxu0 0.0
        %871 = vmatprep.subr.mxu0 0.0
        %872 = vmatpush1.msra.mxu0 0.0
        %873 = vmatprep.subr.mxu0 0.0
        %874 = vmatpush1.msra.mxu0 0.0
        %875 = vmatprep.subr.mxu0 0.0
        %876 = vmatpush1.msra.mxu0 0.0
        %877 = vmatprep.subr.mxu0 0.0
        %878 = vmatpush1.msra.mxu0 0.0
        %879 = vmatprep.subr.mxu0 0.0
        %880 = vmatpush1.msra.mxu0 0.0
        %881 = vmatprep.subr.mxu0 0.0
        %882 = vmatpush1.msra.mxu0 0.0
        %883 = vmatprep.subr.mxu0 0.0
        %884 = vmatpush1.msra.mxu0 0.0
        %885 = vmatprep.subr.mxu0 0.0
        %886 = vmatpush1.msra.mxu0 0.0
        %887 = vmatprep.subr.mxu0 0.0
        %888 = vmatpush1.msra.mxu0 0.0
        %889 = vmatprep.subr.mxu0 0.0
        %890 = vmatpush1.msra.mxu0 0.0
        %891 = vmatprep.subr.mxu0 0.0
        %892 = vmatpush1.msra.mxu0 0.0
        %893 = vmatprep.subr.mxu0 0.0
        %894 = vmatpush1.msra.mxu0 0.0
        %895 = vmatprep.subr.mxu0 0.0
        %896 = vmatpush1.msra.mxu0 0.0
        %897 = vmatprep.subr.mxu0 0.0
        %898 = vmatpush1.msra.mxu0 0.0
        %899 = vmatprep.subr.mxu0 0.0
        %900 = vmatpush1.msra.mxu0 0.0
        %901 = vmatprep.subr.mxu0 0.0
        %902 = vmatpush1.msra.mxu0 0.0
        %903 = vmatprep.subr.mxu0 0.0
        %904 = vmatpush1.msra.mxu0 0.0
        %905 = vmatprep.subr.mxu0 0.0
        %906 = vmatpush1.msra.mxu0 0.0
        %907 = vmatprep.subr.mxu0 0.0
        %908 = vmatpush1.msra.mxu0 0.0
        %909 = vmatprep.subr.mxu0 0.0
        %910 = vmatpush1.msra.mxu0 0.0
        %911 = vmatprep.subr.mxu0 0.0
        %912 = vmatpush1.msra.mxu0 0.0
        %913 = vmatprep.subr.mxu0 0.0
        %914 = vmatpush1.msra.mxu0 0.0
        %915 = vmatprep.mubr.f32.mxu0 0.0
        %v916 = vand.u32 %v695, 4294901760
        %v917 = vsub.f32 %v695, %v916
        %918 = vmatmul.mubr.f32.gmra.mrb[0].mxu0 %v917
        %v919 = vpop.f32.mrb[0].mxu0
        %v920 = vadd.f32 %v846, %v919
        %v921 = vpop.f32.mrb[0].mxu0
        %922 = vdwg.mxu0
        %923 = vmatprep.subr.mxu0 0.0
        %v924 = vand.u32 %v692, 4294901760
        %925 = vmatpush1.msra.mxu0 %v924
        %926 = vmatprep.subr.mxu0 0.0
        %927 = vmatpush1.msra.mxu0 0.0
        %928 = vmatprep.subr.mxu0 0.0
        %929 = vmatpush1.msra.mxu0 0.0
        %930 = vmatprep.subr.mxu0 0.0
        %931 = vmatpush1.msra.mxu0 0.0
        %932 = vmatprep.subr.mxu0 0.0
        %933 = vmatpush1.msra.mxu0 0.0
        %934 = vmatprep.subr.mxu0 0.0
        %935 = vmatpush1.msra.mxu0 0.0
        %936 = vmatprep.subr.mxu0 0.0
        %937 = vmatpush1.msra.mxu0 0.0
        %938 = vmatprep.subr.mxu0 0.0
        %939 = vmatpush1.msra.mxu0 0.0
        %940 = vmatprep.subr.mxu0 0.0
        %941 = vmatpush1.msra.mxu0 0.0
        %942 = vmatprep.subr.mxu0 0.0
        %943 = vmatpush1.msra.mxu0 0.0
        %944 = vmatprep.subr.mxu0 0.0
        %945 = vmatpush1.msra.mxu0 0.0
        %946 = vmatprep.subr.mxu0 0.0
        %947 = vmatpush1.msra.mxu0 0.0
        %948 = vmatprep.subr.mxu0 0.0
        %949 = vmatpush1.msra.mxu0 0.0
        %950 = vmatprep.subr.mxu0 0.0
        %951 = vmatpush1.msra.mxu0 0.0
        %952 = vmatprep.subr.mxu0 0.0
        %953 = vmatpush1.msra.mxu0 0.0
        %954 = vmatprep.subr.mxu0 0.0
        %955 = vmatpush1.msra.mxu0 0.0
        %956 = vmatprep.subr.mxu0 0.0
        %957 = vmatpush1.msra.mxu0 0.0
        %958 = vmatprep.subr.mxu0 0.0
        %959 = vmatpush1.msra.mxu0 0.0
        %960 = vmatprep.subr.mxu0 0.0
        %961 = vmatpush1.msra.mxu0 0.0
        %962 = vmatprep.subr.mxu0 0.0
        %963 = vmatpush1.msra.mxu0 0.0
        %964 = vmatprep.subr.mxu0 0.0
        %965 = vmatpush1.msra.mxu0 0.0
        %966 = vmatprep.subr.mxu0 0.0
        %967 = vmatpush1.msra.mxu0 0.0
        %968 = vmatprep.subr.mxu0 0.0
        %969 = vmatpush1.msra.mxu0 0.0
        %970 = vmatprep.subr.mxu0 0.0
        %971 = vmatpush1.msra.mxu0 0.0
        %972 = vmatprep.subr.mxu0 0.0
        %973 = vmatpush1.msra.mxu0 0.0
        %974 = vmatprep.subr.mxu0 0.0
        %975 = vmatpush1.msra.mxu0 0.0
        %976 = vmatprep.subr.mxu0 0.0
        %977 = vmatpush1.msra.mxu0 0.0
        %978 = vmatprep.subr.mxu0 0.0
        %979 = vmatpush1.msra.mxu0 0.0
        %980 = vmatprep.subr.mxu0 0.0
        %981 = vmatpush1.msra.mxu0 0.0
        %982 = vmatprep.subr.mxu0 0.0
        %983 = vmatpush1.msra.mxu0 0.0
        %984 = vmatprep.subr.mxu0 0.0
        %985 = vmatpush1.msra.mxu0 0.0
        %986 = vmatprep.subr.mxu0 0.0
        %987 = vmatpush1.msra.mxu0 0.0
        %988 = vmatprep.mubr.f32.mxu0 0.0
        %v989 = vand.u32 %v695, 4294901760
        %v990 = vsub.f32 %v695, %v989
        %v991 = vand.u32 %v990, 4294901760
        %992 = vmatmul.mubr.f32.gmra.mrb[0].mxu0 %v991
        %v993 = vpop.f32.mrb[0].mxu0
        %v994 = vadd.f32 %v920, %v993
        %v995 = vpop.f32.mrb[0].mxu0
        %996 = vdwg.mxu0
        %997 = vmatprep.subr.mxu0 0.0
        %v998 = vand.u32 %v692, 4294901760
        %v999 = vsub.f32 %v692, %v998
        %v1000 = vand.u32 %v999, 4294901760
        %1001 = vmatpush1.msra.mxu0 %v1000
        %1002 = vmatprep.subr.mxu0 0.0
        %1003 = vmatpush1.msra.mxu0 0.0
        %1004 = vmatprep.subr.mxu0 0.0
        %1005 = vmatpush1.msra.mxu0 0.0
        %1006 = vmatprep.subr.mxu0 0.0
        %1007 = vmatpush1.msra.mxu0 0.0
        %1008 = vmatprep.subr.mxu0 0.0
        %1009 = vmatpush1.msra.mxu0 0.0
        %1010 = vmatprep.subr.mxu0 0.0
        %1011 = vmatpush1.msra.mxu0 0.0
        %1012 = vmatprep.subr.mxu0 0.0
        %1013 = vmatpush1.msra.mxu0 0.0
        %1014 = vmatprep.subr.mxu0 0.0
        %1015 = vmatpush1.msra.mxu0 0.0
        %1016 = vmatprep.subr.mxu0 0.0
        %1017 = vmatpush1.msra.mxu0 0.0
        %1018 = vmatprep.subr.mxu0 0.0
        %1019 = vmatpush1.msra.mxu0 0.0
        %1020 = vmatprep.subr.mxu0 0.0
        %1021 = vmatpush1.msra.mxu0 0.0
        %1022 = vmatprep.subr.mxu0 0.0
        %1023 = vmatpush1.msra.mxu0 0.0
        %1024 = vmatprep.subr.mxu0 0.0
        %1025 = vmatpush1.msra.mxu0 0.0
        %1026 = vmatprep.subr.mxu0 0.0
        %1027 = vmatpush1.msra.mxu0 0.0
        %1028 = vmatprep.subr.mxu0 0.0
        %1029 = vmatpush1.msra.mxu0 0.0
        %1030 = vmatprep.subr.mxu0 0.0
        %1031 = vmatpush1.msra.mxu0 0.0
        %1032 = vmatprep.subr.mxu0 0.0
        %1033 = vmatpush1.msra.mxu0 0.0
        %1034 = vmatprep.subr.mxu0 0.0
        %1035 = vmatpush1.msra.mxu0 0.0
        %1036 = vmatprep.subr.mxu0 0.0
        %1037 = vmatpush1.msra.mxu0 0.0
        %1038 = vmatprep.subr.mxu0 0.0
        %1039 = vmatpush1.msra.mxu0 0.0
        %1040 = vmatprep.subr.mxu0 0.0
        %1041 = vmatpush1.msra.mxu0 0.0
        %1042 = vmatprep.subr.mxu0 0.0
        %1043 = vmatpush1.msra.mxu0 0.0
        %1044 = vmatprep.subr.mxu0 0.0
        %1045 = vmatpush1.msra.mxu0 0.0
        %1046 = vmatprep.subr.mxu0 0.0
        %1047 = vmatpush1.msra.mxu0 0.0
        %1048 = vmatprep.subr.mxu0 0.0
        %1049 = vmatpush1.msra.mxu0 0.0
        %1050 = vmatprep.subr.mxu0 0.0
        %1051 = vmatpush1.msra.mxu0 0.0
        %1052 = vmatprep.subr.mxu0 0.0
        %1053 = vmatpush1.msra.mxu0 0.0
        %1054 = vmatprep.subr.mxu0 0.0
        %1055 = vmatpush1.msra.mxu0 0.0
        %1056 = vmatprep.subr.mxu0 0.0
        %1057 = vmatpush1.msra.mxu0 0.0
        %1058 = vmatprep.subr.mxu0 0.0
        %1059 = vmatpush1.msra.mxu0 0.0
        %1060 = vmatprep.subr.mxu0 0.0
        %1061 = vmatpush1.msra.mxu0 0.0
        %1062 = vmatprep.subr.mxu0 0.0
        %1063 = vmatpush1.msra.mxu0 0.0
        %1064 = vmatprep.mubr.f32.mxu0 0.0
        %v1065 = vand.u32 %v695, 4294901760
        %1066 = vmatmul.mubr.f32.gmra.mrb[0].mxu0 %v1065
        %v1067 = vpop.f32.mrb[0].mxu0
        %v1068 = vadd.f32 %v994, %v1067
        %v1069 = vpop.f32.mrb[0].mxu0
        %1070 = vdwg.mxu0
        %1071 = vmatprep.subr.mxu0 0.0
        %v1072 = vand.u32 %v692, 4294901760
        %1073 = vmatpush1.msra.mxu0 %v1072
        %1074 = vmatprep.subr.mxu0 0.0
        %1075 = vmatpush1.msra.mxu0 0.0
        %1076 = vmatprep.subr.mxu0 0.0
        %1077 = vmatpush1.msra.mxu0 0.0
        %1078 = vmatprep.subr.mxu0 0.0
        %1079 = vmatpush1.msra.mxu0 0.0
        %1080 = vmatprep.subr.mxu0 0.0
        %1081 = vmatpush1.msra.mxu0 0.0
        %1082 = vmatprep.subr.mxu0 0.0
        %1083 = vmatpush1.msra.mxu0 0.0
        %1084 = vmatprep.subr.mxu0 0.0
        %1085 = vmatpush1.msra.mxu0 0.0
        %1086 = vmatprep.subr.mxu0 0.0
        %1087 = vmatpush1.msra.mxu0 0.0
        %1088 = vmatprep.subr.mxu0 0.0
        %1089 = vmatpush1.msra.mxu0 0.0
        %1090 = vmatprep.subr.mxu0 0.0
        %1091 = vmatpush1.msra.mxu0 0.0
        %1092 = vmatprep.subr.mxu0 0.0
        %1093 = vmatpush1.msra.mxu0 0.0
        %1094 = vmatprep.subr.mxu0 0.0
        %1095 = vmatpush1.msra.mxu0 0.0
        %1096 = vmatprep.subr.mxu0 0.0
        %1097 = vmatpush1.msra.mxu0 0.0
        %1098 = vmatprep.subr.mxu0 0.0
        %1099 = vmatpush1.msra.mxu0 0.0
        %1100 = vmatprep.subr.mxu0 0.0
        %1101 = vmatpush1.msra.mxu0 0.0
        %1102 = vmatprep.subr.mxu0 0.0
        %1103 = vmatpush1.msra.mxu0 0.0
        %1104 = vmatprep.subr.mxu0 0.0
        %1105 = vmatpush1.msra.mxu0 0.0
        %1106 = vmatprep.subr.mxu0 0.0
        %1107 = vmatpush1.msra.mxu0 0.0
        %1108 = vmatprep.subr.mxu0 0.0
        %1109 = vmatpush1.msra.mxu0 0.0
        %1110 = vmatprep.subr.mxu0 0.0
        %1111 = vmatpush1.msra.mxu0 0.0
        %1112 = vmatprep.subr.mxu0 0.0
        %1113 = vmatpush1.msra.mxu0 0.0
        %1114 = vmatprep.subr.mxu0 0.0
        %1115 = vmatpush1.msra.mxu0 0.0
        %1116 = vmatprep.subr.mxu0 0.0
        %1117 = vmatpush1.msra.mxu0 0.0
        %1118 = vmatprep.subr.mxu0 0.0
        %1119 = vmatpush1.msra.mxu0 0.0
        %1120 = vmatprep.subr.mxu0 0.0
        %1121 = vmatpush1.msra.mxu0 0.0
        %1122 = vmatprep.subr.mxu0 0.0
        %1123 = vmatpush1.msra.mxu0 0.0
        %1124 = vmatprep.subr.mxu0 0.0
        %1125 = vmatpush1.msra.mxu0 0.0
        %1126 = vmatprep.subr.mxu0 0.0
        %1127 = vmatpush1.msra.mxu0 0.0
        %1128 = vmatprep.subr.mxu0 0.0
        %1129 = vmatpush1.msra.mxu0 0.0
        %1130 = vmatprep.subr.mxu0 0.0
        %1131 = vmatpush1.msra.mxu0 0.0
        %1132 = vmatprep.subr.mxu0 0.0
        %1133 = vmatpush1.msra.mxu0 0.0
        %1134 = vmatprep.subr.mxu0 0.0
        %1135 = vmatpush1.msra.mxu0 0.0
        %1136 = vmatprep.mubr.f32.mxu0 0.0
        %v1137 = vand.u32 %v695, 4294901760
        %1138 = vmatmul.mubr.f32.gmra.mrb[0].mxu0 %v1137
        %v1139 = vpop.f32.mrb[0].mxu0
        %v1140 = vadd.f32 %v1068, %v1139
        %v1141 = vpop.f32.mrb[0].mxu0
        %1142 = vdwg.mxu0
        %v1143 = vadd.f32 %v684, %v1140
        %1144 = vrot.lane.b32.xlu0 %v232, 126
        %v1145 = vpop.permute.xlu0 %1144
        %1146 = vrot.lane.b32.xlu0 %v233, 126
        %v1147 = vpop.permute.xlu0 %1146
        %vm1148 = vcmask 1031168
        %v1149 = vsel %vm1148, %v1145, %v1147
        %v1152 = vsel %vm234, %v220, 0
        %1154 = vmatprep.subr.mxu0 0.0
        %v1155 = vand.u32 %v1149, 4294901760
        %1156 = vmatpush1.msra.mxu0 %v1155
        %1157 = vmatprep.subr.mxu0 0.0
        %1158 = vmatpush1.msra.mxu0 0.0
        %1159 = vmatprep.subr.mxu0 0.0
        %1160 = vmatpush1.msra.mxu0 0.0
        %1161 = vmatprep.subr.mxu0 0.0
        %1162 = vmatpush1.msra.mxu0 0.0
        %1163 = vmatprep.subr.mxu0 0.0
        %1164 = vmatpush1.msra.mxu0 0.0
        %1165 = vmatprep.subr.mxu0 0.0
        %1166 = vmatpush1.msra.mxu0 0.0
        %1167 = vmatprep.subr.mxu0 0.0
        %1168 = vmatpush1.msra.mxu0 0.0
        %1169 = vmatprep.subr.mxu0 0.0
        %1170 = vmatpush1.msra.mxu0 0.0
        %1171 = vmatprep.subr.mxu0 0.0
        %1172 = vmatpush1.msra.mxu0 0.0
        %1173 = vmatprep.subr.mxu0 0.0
        %1174 = vmatpush1.msra.mxu0 0.0
        %1175 = vmatprep.subr.mxu0 0.0
        %1176 = vmatpush1.msra.mxu0 0.0
        %1177 = vmatprep.subr.mxu0 0.0
        %1178 = vmatpush1.msra.mxu0 0.0
        %1179 = vmatprep.subr.mxu0 0.0
        %1180 = vmatpush1.msra.mxu0 0.0
        %1181 = vmatprep.subr.mxu0 0.0
        %1182 = vmatpush1.msra.mxu0 0.0
        %1183 = vmatprep.subr.mxu0 0.0
        %1184 = vmatpush1.msra.mxu0 0.0
        %1185 = vmatprep.subr.mxu0 0.0
        %1186 = vmatpush1.msra.mxu0 0.0
        %1187 = vmatprep.subr.mxu0 0.0
        %1188 = vmatpush1.msra.mxu0 0.0
        %1189 = vmatprep.subr.mxu0 0.0
        %1190 = vmatpush1.msra.mxu0 0.0
        %1191 = vmatprep.subr.mxu0 0.0
        %1192 = vmatpush1.msra.mxu0 0.0
        %1193 = vmatprep.subr.mxu0 0.0
        %1194 = vmatpush1.msra.mxu0 0.0
        %1195 = vmatprep.subr.mxu0 0.0
        %1196 = vmatpush1.msra.mxu0 0.0
        %1197 = vmatprep.subr.mxu0 0.0
        %1198 = vmatpush1.msra.mxu0 0.0
        %1199 = vmatprep.subr.mxu0 0.0
        %1200 = vmatpush1.msra.mxu0 0.0
        %1201 = vmatprep.subr.mxu0 0.0
        %1202 = vmatpush1.msra.mxu0 0.0
        %1203 = vmatprep.subr.mxu0 0.0
        %1204 = vmatpush1.msra.mxu0 0.0
        %1205 = vmatprep.subr.mxu0 0.0
        %1206 = vmatpush1.msra.mxu0 0.0
        %1207 = vmatprep.subr.mxu0 0.0
        %1208 = vmatpush1.msra.mxu0 0.0
        %1209 = vmatprep.subr.mxu0 0.0
        %1210 = vmatpush1.msra.mxu0 0.0
        %1211 = vmatprep.subr.mxu0 0.0
        %1212 = vmatpush1.msra.mxu0 0.0
        %1213 = vmatprep.subr.mxu0 0.0
        %1214 = vmatpush1.msra.mxu0 0.0
        %1215 = vmatprep.subr.mxu0 0.0
        %1216 = vmatpush1.msra.mxu0 0.0
        %1217 = vmatprep.subr.mxu0 0.0
        %1218 = vmatpush1.msra.mxu0 0.0
        %1219 = vmatprep.mubr.f32.mxu0 0.0
        %v1220 = vand.u32 %v1152, 4294901760
        %v1221 = vsub.f32 %v1152, %v1220
        %v1222 = vand.u32 %v1221, 4294901760
        %v1223 = vsub.f32 %v1221, %v1222
        %v1224 = vand.u32 %v1223, 4294901760
        %1225 = vmatmul.mubr.f32.gmra.mrb[0].mxu0 %v1224
        %v1226 = vpop.f32.mrb[0].mxu0
        %v1227 = vadd.f32 0.0, %v1226
        %v1228 = vpop.f32.mrb[0].mxu0
        %1229 = vdwg.mxu0
        %1230 = vmatprep.subr.mxu0 0.0
        %v1231 = vand.u32 %v1149, 4294901760
        %v1232 = vsub.f32 %v1149, %v1231
        %v1233 = vand.u32 %v1232, 4294901760
        %v1234 = vsub.f32 %v1232, %v1233
        %v1235 = vand.u32 %v1234, 4294901760
        %1236 = vmatpush1.msra.mxu0 %v1235
        %1237 = vmatprep.subr.mxu0 0.0
        %1238 = vmatpush1.msra.mxu0 0.0
        %1239 = vmatprep.subr.mxu0 0.0
        %1240 = vmatpush1.msra.mxu0 0.0
        %1241 = vmatprep.subr.mxu0 0.0
        %1242 = vmatpush1.msra.mxu0 0.0
        %1243 = vmatprep.subr.mxu0 0.0
        %1244 = vmatpush1.msra.mxu0 0.0
        %1245 = vmatprep.subr.mxu0 0.0
        %1246 = vmatpush1.msra.mxu0 0.0
        %1247 = vmatprep.subr.mxu0 0.0
        %1248 = vmatpush1.msra.mxu0 0.0
        %1249 = vmatprep.subr.mxu0 0.0
        %1250 = vmatpush1.msra.mxu0 0.0
        %1251 = vmatprep.subr.mxu0 0.0
        %1252 = vmatpush1.msra.mxu0 0.0
        %1253 = vmatprep.subr.mxu0 0.0
        %1254 = vmatpush1.msra.mxu0 0.0
        %1255 = vmatprep.subr.mxu0 0.0
        %1256 = vmatpush1.msra.mxu0 0.0
        %1257 = vmatprep.subr.mxu0 0.0
        %1258 = vmatpush1.msra.mxu0 0.0
        %1259 = vmatprep.subr.mxu0 0.0
        %1260 = vmatpush1.msra.mxu0 0.0
        %1261 = vmatprep.subr.mxu0 0.0
        %1262 = vmatpush1.msra.mxu0 0.0
        %1263 = vmatprep.subr.mxu0 0.0
        %1264 = vmatpush1.msra.mxu0 0.0
        %1265 = vmatprep.subr.mxu0 0.0
        %1266 = vmatpush1.msra.mxu0 0.0
        %1267 = vmatprep.subr.mxu0 0.0
        %1268 = vmatpush1.msra.mxu0 0.0
        %1269 = vmatprep.subr.mxu0 0.0
        %1270 = vmatpush1.msra.mxu0 0.0
        %1271 = vmatprep.subr.mxu0 0.0
        %1272 = vmatpush1.msra.mxu0 0.0
        %1273 = vmatprep.subr.mxu0 0.0
        %1274 = vmatpush1.msra.mxu0 0.0
        %1275 = vmatprep.subr.mxu0 0.0
        %1276 = vmatpush1.msra.mxu0 0.0
        %1277 = vmatprep.subr.mxu0 0.0
        %1278 = vmatpush1.msra.mxu0 0.0
        %1279 = vmatprep.subr.mxu0 0.0
        %1280 = vmatpush1.msra.mxu0 0.0
        %1281 = vmatprep.subr.mxu0 0.0
        %1282 = vmatpush1.msra.mxu0 0.0
        %1283 = vmatprep.subr.mxu0 0.0
        %1284 = vmatpush1.msra.mxu0 0.0
        %1285 = vmatprep.subr.mxu0 0.0
        %1286 = vmatpush1.msra.mxu0 0.0
        %1287 = vmatprep.subr.mxu0 0.0
        %1288 = vmatpush1.msra.mxu0 0.0
        %1289 = vmatprep.subr.mxu0 0.0
        %1290 = vmatpush1.msra.mxu0 0.0
        %1291 = vmatprep.subr.mxu0 0.0
        %1292 = vmatpush1.msra.mxu0 0.0
        %1293 = vmatprep.subr.mxu0 0.0
        %1294 = vmatpush1.msra.mxu0 0.0
        %1295 = vmatprep.subr.mxu0 0.0
        %1296 = vmatpush1.msra.mxu0 0.0
        %1297 = vmatprep.subr.mxu0 0.0
        %1298 = vmatpush1.msra.mxu0 0.0
        %1299 = vmatprep.mubr.f32.mxu0 0.0
        %v1300 = vand.u32 %v1152, 4294901760
        %1301 = vmatmul.mubr.f32.gmra.mrb[0].mxu0 %v1300
        %v1302 = vpop.f32.mrb[0].mxu0
        %v1303 = vadd.f32 %v1227, %v1302
        %v1304 = vpop.f32.mrb[0].mxu0
        %1305 = vdwg.mxu0
        %1306 = vmatprep.subr.mxu0 0.0
        %v1307 = vand.u32 %v1149, 4294901760
        %v1308 = vsub.f32 %v1149, %v1307
        %1309 = vmatpush1.msra.mxu0 %v1308
        %1310 = vmatprep.subr.mxu0 0.0
        %1311 = vmatpush1.msra.mxu0 0.0
        %1312 = vmatprep.subr.mxu0 0.0
        %1313 = vmatpush1.msra.mxu0 0.0
        %1314 = vmatprep.subr.mxu0 0.0
        %1315 = vmatpush1.msra.mxu0 0.0
        %1316 = vmatprep.subr.mxu0 0.0
        %1317 = vmatpush1.msra.mxu0 0.0
        %1318 = vmatprep.subr.mxu0 0.0
        %1319 = vmatpush1.msra.mxu0 0.0
        %1320 = vmatprep.subr.mxu0 0.0
        %1321 = vmatpush1.msra.mxu0 0.0
        %1322 = vmatprep.subr.mxu0 0.0
        %1323 = vmatpush1.msra.mxu0 0.0
        %1324 = vmatprep.subr.mxu0 0.0
        %1325 = vmatpush1.msra.mxu0 0.0
        %1326 = vmatprep.subr.mxu0 0.0
        %1327 = vmatpush1.msra.mxu0 0.0
        %1328 = vmatprep.subr.mxu0 0.0
        %1329 = vmatpush1.msra.mxu0 0.0
        %1330 = vmatprep.subr.mxu0 0.0
        %1331 = vmatpush1.msra.mxu0 0.0
        %1332 = vmatprep.subr.mxu0 0.0
        %1333 = vmatpush1.msra.mxu0 0.0
        %1334 = vmatprep.subr.mxu0 0.0
        %1335 = vmatpush1.msra.mxu0 0.0
        %1336 = vmatprep.subr.mxu0 0.0
        %1337 = vmatpush1.msra.mxu0 0.0
        %1338 = vmatprep.subr.mxu0 0.0
        %1339 = vmatpush1.msra.mxu0 0.0
        %1340 = vmatprep.subr.mxu0 0.0
        %1341 = vmatpush1.msra.mxu0 0.0
        %1342 = vmatprep.subr.mxu0 0.0
        %1343 = vmatpush1.msra.mxu0 0.0
        %1344 = vmatprep.subr.mxu0 0.0
        %1345 = vmatpush1.msra.mxu0 0.0
        %1346 = vmatprep.subr.mxu0 0.0
        %1347 = vmatpush1.msra.mxu0 0.0
        %1348 = vmatprep.subr.mxu0 0.0
        %1349 = vmatpush1.msra.mxu0 0.0
        %1350 = vmatprep.subr.mxu0 0.0
        %1351 = vmatpush1.msra.mxu0 0.0
        %1352 = vmatprep.subr.mxu0 0.0
        %1353 = vmatpush1.msra.mxu0 0.0
        %1354 = vmatprep.subr.mxu0 0.0
        %1355 = vmatpush1.msra.mxu0 0.0
        %1356 = vmatprep.subr.mxu0 0.0
        %1357 = vmatpush1.msra.mxu0 0.0
        %1358 = vmatprep.subr.mxu0 0.0
        %1359 = vmatpush1.msra.mxu0 0.0
        %1360 = vmatprep.subr.mxu0 0.0
        %1361 = vmatpush1.msra.mxu0 0.0
        %1362 = vmatprep.subr.mxu0 0.0
        %1363 = vmatpush1.msra.mxu0 0.0
        %1364 = vmatprep.subr.mxu0 0.0
        %1365 = vmatpush1.msra.mxu0 0.0
        %1366 = vmatprep.subr.mxu0 0.0
        %1367 = vmatpush1.msra.mxu0 0.0
        %1368 = vmatprep.subr.mxu0 0.0
        %1369 = vmatpush1.msra.mxu0 0.0
        %1370 = vmatprep.subr.mxu0 0.0
        %1371 = vmatpush1.msra.mxu0 0.0
        %1372 = vmatprep.mubr.f32.mxu0 0.0
        %v1373 = vand.u32 %v1152, 4294901760
        %v1374 = vsub.f32 %v1152, %v1373
        %1375 = vmatmul.mubr.f32.gmra.mrb[0].mxu0 %v1374
        %v1376 = vpop.f32.mrb[0].mxu0
        %v1377 = vadd.f32 %v1303, %v1376
        %v1378 = vpop.f32.mrb[0].mxu0
        %1379 = vdwg.mxu0
        %1380 = vmatprep.subr.mxu0 0.0
        %v1381 = vand.u32 %v1149, 4294901760
        %1382 = vmatpush1.msra.mxu0 %v1381
        %1383 = vmatprep.subr.mxu0 0.0
        %1384 = vmatpush1.msra.mxu0 0.0
        %1385 = vmatprep.subr.mxu0 0.0
        %1386 = vmatpush1.msra.mxu0 0.0
        %1387 = vmatprep.subr.mxu0 0.0
        %1388 = vmatpush1.msra.mxu0 0.0
        %1389 = vmatprep.subr.mxu0 0.0
        %1390 = vmatpush1.msra.mxu0 0.0
        %1391 = vmatprep.subr.mxu0 0.0
        %1392 = vmatpush1.msra.mxu0 0.0
        %1393 = vmatprep.subr.mxu0 0.0
        %1394 = vmatpush1.msra.mxu0 0.0
        %1395 = vmatprep.subr.mxu0 0.0
        %1396 = vmatpush1.msra.mxu0 0.0
        %1397 = vmatprep.subr.mxu0 0.0
        %1398 = vmatpush1.msra.mxu0 0.0
        %1399 = vmatprep.subr.mxu0 0.0
        %1400 = vmatpush1.msra.mxu0 0.0
        %1401 = vmatprep.subr.mxu0 0.0
        %1402 = vmatpush1.msra.mxu0 0.0
        %1403 = vmatprep.subr.mxu0 0.0
        %1404 = vmatpush1.msra.mxu0 0.0
        %1405 = vmatprep.subr.mxu0 0.0
        %1406 = vmatpush1.msra.mxu0 0.0
        %1407 = vmatprep.subr.mxu0 0.0
        %1408 = vmatpush1.msra.mxu0 0.0
        %1409 = vmatprep.subr.mxu0 0.0
        %1410 = vmatpush1.msra.mxu0 0.0
        %1411 = vmatprep.subr.mxu0 0.0
        %1412 = vmatpush1.msra.mxu0 0.0
        %1413 = vmatprep.subr.mxu0 0.0
        %1414 = vmatpush1.msra.mxu0 0.0
        %1415 = vmatprep.subr.mxu0 0.0
        %1416 = vmatpush1.msra.mxu0 0.0
        %1417 = vmatprep.subr.mxu0 0.0
        %1418 = vmatpush1.msra.mxu0 0.0
        %1419 = vmatprep.subr.mxu0 0.0
        %1420 = vmatpush1.msra.mxu0 0.0
        %1421 = vmatprep.subr.mxu0 0.0
        %1422 = vmatpush1.msra.mxu0 0.0
        %1423 = vmatprep.subr.mxu0 0.0
        %1424 = vmatpush1.msra.mxu0 0.0
        %1425 = vmatprep.subr.mxu0 0.0
        %1426 = vmatpush1.msra.mxu0 0.0
        %1427 = vmatprep.subr.mxu0 0.0
        %1428 = vmatpush1.msra.mxu0 0.0
        %1429 = vmatprep.subr.mxu0 0.0
        %1430 = vmatpush1.msra.mxu0 0.0
        %1431 = vmatprep.subr.mxu0 0.0
        %1432 = vmatpush1.msra.mxu0 0.0
        %1433 = vmatprep.subr.mxu0 0.0
        %1434 = vmatpush1.msra.mxu0 0.0
        %1435 = vmatprep.subr.mxu0 0.0
        %1436 = vmatpush1.msra.mxu0 0.0
        %1437 = vmatprep.subr.mxu0 0.0
        %1438 = vmatpush1.msra.mxu0 0.0
        %1439 = vmatprep.subr.mxu0 0.0
        %1440 = vmatpush1.msra.mxu0 0.0
        %1441 = vmatprep.subr.mxu0 0.0
        %1442 = vmatpush1.msra.mxu0 0.0
        %1443 = vmatprep.subr.mxu0 0.0
        %1444 = vmatpush1.msra.mxu0 0.0
        %1445 = vmatprep.mubr.f32.mxu0 0.0
        %v1446 = vand.u32 %v1152, 4294901760
        %v1447 = vsub.f32 %v1152, %v1446
        %v1448 = vand.u32 %v1447, 4294901760
        %1449 = vmatmul.mubr.f32.gmra.mrb[0].mxu0 %v1448
        %v1450 = vpop.f32.mrb[0].mxu0
        %v1451 = vadd.f32 %v1377, %v1450
        %v1452 = vpop.f32.mrb[0].mxu0
        %1453 = vdwg.mxu0
        %1454 = vmatprep.subr.mxu0 0.0
        %v1455 = vand.u32 %v1149, 4294901760
        %v1456 = vsub.f32 %v1149, %v1455
        %v1457 = vand.u32 %v1456, 4294901760
        %1458 = vmatpush1.msra.mxu0 %v1457
        %1459 = vmatprep.subr.mxu0 0.0
        %1460 = vmatpush1.msra.mxu0 0.0
        %1461 = vmatprep.subr.mxu0 0.0
        %1462 = vmatpush1.msra.mxu0 0.0
        %1463 = vmatprep.subr.mxu0 0.0
        %1464 = vmatpush1.msra.mxu0 0.0
        %1465 = vmatprep.subr.mxu0 0.0
        %1466 = vmatpush1.msra.mxu0 0.0
        %1467 = vmatprep.subr.mxu0 0.0
        %1468 = vmatpush1.msra.mxu0 0.0
        %1469 = vmatprep.subr.mxu0 0.0
        %1470 = vmatpush1.msra.mxu0 0.0
        %1471 = vmatprep.subr.mxu0 0.0
        %1472 = vmatpush1.msra.mxu0 0.0
        %1473 = vmatprep.subr.mxu0 0.0
        %1474 = vmatpush1.msra.mxu0 0.0
        %1475 = vmatprep.subr.mxu0 0.0
        %1476 = vmatpush1.msra.mxu0 0.0
        %1477 = vmatprep.subr.mxu0 0.0
        %1478 = vmatpush1.msra.mxu0 0.0
        %1479 = vmatprep.subr.mxu0 0.0
        %1480 = vmatpush1.msra.mxu0 0.0
        %1481 = vmatprep.subr.mxu0 0.0
        %1482 = vmatpush1.msra.mxu0 0.0
        %1483 = vmatprep.subr.mxu0 0.0
        %1484 = vmatpush1.msra.mxu0 0.0
        %1485 = vmatprep.subr.mxu0 0.0
        %1486 = vmatpush1.msra.mxu0 0.0
        %1487 = vmatprep.subr.mxu0 0.0
        %1488 = vmatpush1.msra.mxu0 0.0
        %1489 = vmatprep.subr.mxu0 0.0
        %1490 = vmatpush1.msra.mxu0 0.0
        %1491 = vmatprep.subr.mxu0 0.0
        %1492 = vmatpush1.msra.mxu0 0.0
        %1493 = vmatprep.subr.mxu0 0.0
        %1494 = vmatpush1.msra.mxu0 0.0
        %1495 = vmatprep.subr.mxu0 0.0
        %1496 = vmatpush1.msra.mxu0 0.0
        %1497 = vmatprep.subr.mxu0 0.0
        %1498 = vmatpush1.msra.mxu0 0.0
        %1499 = vmatprep.subr.mxu0 0.0
        %1500 = vmatpush1.msra.mxu0 0.0
        %1501 = vmatprep.subr.mxu0 0.0
        %1502 = vmatpush1.msra.mxu0 0.0
        %1503 = vmatprep.subr.mxu0 0.0
        %1504 = vmatpush1.msra.mxu0 0.0
        %1505 = vmatprep.subr.mxu0 0.0
        %1506 = vmatpush1.msra.mxu0 0.0
        %1507 = vmatprep.subr.mxu0 0.0
        %1508 = vmatpush1.msra.mxu0 0.0
        %1509 = vmatprep.subr.mxu0 0.0
        %1510 = vmatpush1.msra.mxu0 0.0
        %1511 = vmatprep.subr.mxu0 0.0
        %1512 = vmatpush1.msra.mxu0 0.0
        %1513 = vmatprep.subr.mxu0 0.0
        %1514 = vmatpush1.msra.mxu0 0.0
        %1515 = vmatprep.subr.mxu0 0.0
        %1516 = vmatpush1.msra.mxu0 0.0
        %1517 = vmatprep.subr.mxu0 0.0
        %1518 = vmatpush1.msra.mxu0 0.0
        %1519 = vmatprep.subr.mxu0 0.0
        %1520 = vmatpush1.msra.mxu0 0.0
        %1521 = vmatprep.mubr.f32.mxu0 0.0
        %v1522 = vand.u32 %v1152, 4294901760
        %1523 = vmatmul.mubr.f32.gmra.mrb[0].mxu0 %v1522
        %v1524 = vpop.f32.mrb[0].mxu0
        %v1525 = vadd.f32 %v1451, %v1524
        %v1526 = vpop.f32.mrb[0].mxu0
        %1527 = vdwg.mxu0
        %1528 = vmatprep.subr.mxu0 0.0
        %v1529 = vand.u32 %v1149, 4294901760
        %1530 = vmatpush1.msra.mxu0 %v1529
        %1531 = vmatprep.subr.mxu0 0.0
        %1532 = vmatpush1.msra.mxu0 0.0
        %1533 = vmatprep.subr.mxu0 0.0
        %1534 = vmatpush1.msra.mxu0 0.0
        %1535 = vmatprep.subr.mxu0 0.0
        %1536 = vmatpush1.msra.mxu0 0.0
        %1537 = vmatprep.subr.mxu0 0.0
        %1538 = vmatpush1.msra.mxu0 0.0
        %1539 = vmatprep.subr.mxu0 0.0
        %1540 = vmatpush1.msra.mxu0 0.0
        %1541 = vmatprep.subr.mxu0 0.0
        %1542 = vmatpush1.msra.mxu0 0.0
        %1543 = vmatprep.subr.mxu0 0.0
        %1544 = vmatpush1.msra.mxu0 0.0
        %1545 = vmatprep.subr.mxu0 0.0
        %1546 = vmatpush1.msra.mxu0 0.0
        %1547 = vmatprep.subr.mxu0 0.0
        %1548 = vmatpush1.msra.mxu0 0.0
        %1549 = vmatprep.subr.mxu0 0.0
        %1550 = vmatpush1.msra.mxu0 0.0
        %1551 = vmatprep.subr.mxu0 0.0
        %1552 = vmatpush1.msra.mxu0 0.0
        %1553 = vmatprep.subr.mxu0 0.0
        %1554 = vmatpush1.msra.mxu0 0.0
        %1555 = vmatprep.subr.mxu0 0.0
        %1556 = vmatpush1.msra.mxu0 0.0
        %1557 = vmatprep.subr.mxu0 0.0
        %1558 = vmatpush1.msra.mxu0 0.0
        %1559 = vmatprep.subr.mxu0 0.0
        %1560 = vmatpush1.msra.mxu0 0.0
        %1561 = vmatprep.subr.mxu0 0.0
        %1562 = vmatpush1.msra.mxu0 0.0
        %1563 = vmatprep.subr.mxu0 0.0
        %1564 = vmatpush1.msra.mxu0 0.0
        %1565 = vmatprep.subr.mxu0 0.0
        %1566 = vmatpush1.msra.mxu0 0.0
        %1567 = vmatprep.subr.mxu0 0.0
        %1568 = vmatpush1.msra.mxu0 0.0
        %1569 = vmatprep.subr.mxu0 0.0
        %1570 = vmatpush1.msra.mxu0 0.0
        %1571 = vmatprep.subr.mxu0 0.0
        %1572 = vmatpush1.msra.mxu0 0.0
        %1573 = vmatprep.subr.mxu0 0.0
        %1574 = vmatpush1.msra.mxu0 0.0
        %1575 = vmatprep.subr.mxu0 0.0
        %1576 = vmatpush1.msra.mxu0 0.0
        %1577 = vmatprep.subr.mxu0 0.0
        %1578 = vmatpush1.msra.mxu0 0.0
        %1579 = vmatprep.subr.mxu0 0.0
        %1580 = vmatpush1.msra.mxu0 0.0
        %1581 = vmatprep.subr.mxu0 0.0
        %1582 = vmatpush1.msra.mxu0 0.0
        %1583 = vmatprep.subr.mxu0 0.0
        %1584 = vmatpush1.msra.mxu0 0.0
        %1585 = vmatprep.subr.mxu0 0.0
        %1586 = vmatpush1.msra.mxu0 0.0
        %1587 = vmatprep.subr.mxu0 0.0
        %1588 = vmatpush1.msra.mxu0 0.0
        %1589 = vmatprep.subr.mxu0 0.0
        %1590 = vmatpush1.msra.mxu0 0.0
        %1591 = vmatprep.subr.mxu0 0.0
        %1592 = vmatpush1.msra.mxu0 0.0
        %1593 = vmatprep.mubr.f32.mxu0 0.0
        %v1594 = vand.u32 %v1152, 4294901760
        %1595 = vmatmul.mubr.f32.gmra.mrb[0].mxu0 %v1594
        %v1596 = vpop.f32.mrb[0].mxu0
        %v1597 = vadd.f32 %v1525, %v1596
        %v1598 = vpop.f32.mrb[0].mxu0
        %1599 = vdwg.mxu0
        %v1600 = vadd.f32 %v1143, %v1597
        %1601 = vst [vmem:[%s215] sm:$0xff] %v1600
        %s1602 = sand.u32 %s111, 1
        %s1603 = scalar_lea.sflag [#allocation4], %s1602
        %s1604 = sand.u32 %s111, 1
        %s1605 = smul.addr %s1604, 8
        %s1606 = scalar_lea.vmem [#allocation7], %s1605
        // Predicated region
        $region41: #{tpu_custom_call.1} parent=31 // pred_check
          %p1607 = pneg %p121
        $region42: #{tpu_custom_call.1} parent=31 // pred_check_branch
          %1609 = sbr.rel (%p1607) target = $region44
        $region43: #{tpu_custom_call.1} parent=31 // pred_region
          %s1611 = ssub.s32 128, 128
          %1612 = vsyncadd %s1603, %s1611
          %s1613 = sadd.s32 %s26, %s25
          %s1614 = smul.addr %s1613, 128
          %s1615 = scalar_lea.hbm %s3, %s1614
          %s1617 = sshll.u32 %s1606, 4
          %s1618 = int_to_ptr.vmem [resolvable:$true] %s1617
          %1620 = dma.vmem_to_hbm [thread:$0]  %s1618, 128, %s1615, %s1603
        $region44: #{tpu_custom_call.1} parent=31 // pred_fallthru
          _
      $region32: #{tpu_custom_call.1} parent=5 // pred_fallthru
        _
      %p1621 = scmp.le.s32.totalorder 2, %s16
      // Predicated region
      $region45: #{tpu_custom_call.1} parent=5 // pred_check
        %p1622 = pneg %p1621
      $region46: #{tpu_custom_call.1} parent=5 // pred_check_branch
        %1624 = sbr.rel (%p1622) target = $region48
      $region47: #{tpu_custom_call.1} parent=5 // pred_region
        %s1625 = ssub.s32 %s16, 2
        // Predicated region
        $region49: #{tpu_custom_call.1} parent=47 // pred_check
          %p1626 = pneg %p127
        $region50: #{tpu_custom_call.1} parent=47 // pred_check_branch
          %1628 = sbr.rel (%p1626) target = $region52
        $region51: #{tpu_custom_call.1} parent=47 // pred_region
          %s1629 = sand.u32 %s112, 1
          %s1630 = scalar_lea.sflag [#allocation4], %s1629
          %s1631 = sand.u32 %s112, 1
          %s1632 = smul.addr %s1631, 8
          %s1633 = scalar_lea.vmem [#allocation7], %s1632
          %1634 = dma.done %s1630, 128
        $region52: #{tpu_custom_call.1} parent=47 // pred_fallthru
          _
      $region48: #{tpu_custom_call.1} parent=5 // pred_fallthru
        _
    $region6: #{tpu_custom_call.1} parent=1 // loop_footer
      %s20 = sadd.s32 1, %s16
    $region7: #{tpu_custom_call.1} parent=1 // loop_footer_branch
      %15 = sbr.rel target = $region3
    $region8: #{tpu_custom_call.1} parent=1 // loop_exit
      _
    %1635 = vsyncpa [#allocation3], 1
    %s1636 = scalar_lea.sflag [#allocation3], 1
    %1637 = vsyncpa %s1636, 1
    %1638 = vsyncpa [#allocation6], 1
    %1639 = vsyncpa [#allocation4], 1
    %s1640 = scalar_lea.sflag [#allocation4], 1
    %1641 = vsyncpa %s1640, 1

</llo_original>
